<compile_context>
chip_gen: v7x
topology: tpu7x:2x2x1
jax: 0.10.0
libtpu: 0.0.40
codegen_flags: <defaults>
</compile_context>

<pallas_src>
import jax
import jax.numpy as jnp
import numpy as np
from jax.experimental import pallas as pl
from jax.experimental.pallas import tpu as pltpu

NUM_CARDS = 26
HAND_FEAT = 5
FUSED_IN = NUM_CARDS * HAND_FEAT + HAND_FEAT   # 135 = hand_flat(130) + adv(5)
K_PAD = 256                                    # fused contraction dim, 2 x 128 lanes
LANE = 128


def _round_up(x, m):
    return ((x + m - 1) // m) * m


# --------------------------------------------------------------------------- #
# Kernel: 4 dependent MXU dots per batch tile, weights VMEM-resident.
# --------------------------------------------------------------------------- #
def actor_critic_kernel(x_ref, w_in_ref, b_in_ref, w1_ref, b1_ref,
                        w2_ref, b2_ref, wh_ref, bh_ref, out_ref):
    f32 = jnp.float32
    cd = w_in_ref.dtype                          # MXU operand dtype (bf16 or f32)

    x = x_ref[...]                               # (TB, 256) compute dtype

    # fused hand + adv branch:
    # relu(x @ block_diag(kron(I26, W_hand), W_adv) + [tile(b_hand) | b_adv])
    h = jnp.maximum(
        jnp.dot(x, w_in_ref[...], preferred_element_type=f32)
        + b_in_ref[...], 0.0)                    # (TB, 27H) f32

    # fc1 over the original [hand_repr(26H), adv_repr(H)] concat (order kept)
    h = jnp.maximum(
        jnp.dot(h.astype(cd), w1_ref[...], preferred_element_type=f32)
        + b1_ref[...], 0.0)                      # (TB, H)

    # fc2
    h = jnp.maximum(
        jnp.dot(h.astype(cd), w2_ref[...], preferred_element_type=f32)
        + b2_ref[...], 0.0)                      # (TB, H)

    # fused policy + value head, lane-padded to 128 columns (lane-dense store)
    out_ref[...] = (jnp.dot(h.astype(cd), wh_ref[...],
                            preferred_element_type=f32)
                    + bh_ref[...])               # (TB, 128) f32


# --------------------------------------------------------------------------- #
# One-off weight packing (call at parameter-load time, NOT per forward).
# --------------------------------------------------------------------------- #
def pack_params(params, compute_dtype=jnp.bfloat16):
    f32 = jnp.float32
    cd = compute_dtype
    H = params["w_hand"].shape[1]
    A = params["w_policy"].shape[1]
    D1 = (NUM_CARDS + 1) * H
    n_out = _round_up(A + 1, LANE)

    w_hand = params["w_hand"].astype(f32)        # (5, H)
    w_adv = params["w_adv"].astype(f32)          # (5, H)

    # block_diag(kron(I_26, W_hand), W_adv), rows zero-padded 135 -> 256
    top = jnp.concatenate(
        [jnp.kron(jnp.eye(NUM_CARDS, dtype=f32), w_hand),
         jnp.zeros((NUM_CARDS * HAND_FEAT, H), f32)], axis=1)          # (130, 27H)
    bot = jnp.concatenate(
        [jnp.zeros((HAND_FEAT, NUM_CARDS * H), f32), w_adv], axis=1)   # (5, 27H)
    w_in = jnp.concatenate(
        [top, bot, jnp.zeros((K_PAD - FUSED_IN, D1), f32)], axis=0)    # (256, 27H)
    b_in = jnp.concatenate(
        [jnp.tile(params["b_hand"].astype(f32), (1, NUM_CARDS)),
         params["b_adv"].astype(f32)], axis=1)                         # (1, 27H)

    # fused heads, lane-padded to n_out columns
    w_heads = jnp.concatenate(
        [params["w_policy"].astype(f32), params["w_value"].astype(f32),
         jnp.zeros((H, n_out - (A + 1)), f32)], axis=1)                # (H, 128)
    b_heads = jnp.concatenate(
        [params["b_policy"].astype(f32), params["b_value"].astype(f32),
         jnp.zeros((1, n_out - (A + 1)), f32)], axis=1)                # (1, 128)

    return {
        "hidden_dim": H,
        "action_dim": A,
        "compute_dtype": cd,
        "w_in": w_in.astype(cd),
        "b_in": b_in,                              # f32
        "w1": params["w1"].astype(cd),             # (27H, H)
        "b1": params["b1"].astype(f32),
        "w2": params["w2"].astype(cd),             # (H, H)
        "b2": params["b2"].astype(f32),
        "w_heads": w_heads.astype(cd),             # (H, 128)
        "b_heads": b_heads,                        # f32
    }


def _choose_tb(B):
    tb = min(512, _round_up(max(B, 1), 16))        # multiple of 16 (bf16 sublanes)
    if B > 16:
        # ensure >= 2 grid steps so v7x's two TensorCores both get work
        tb = min(tb, _round_up(-(-B // 2), 16))
    return tb


def actor_critic_forward(hand, adv, packed):
    """hand: (B, 26, 5) f32, adv: (B, 5) f32. Returns (logits (B,A), value (B,))."""
    B = hand.shape[0]
    H = packed["hidden_dim"]
    A = packed["action_dim"]
    cd = packed["compute_dtype"]
    f32 = jnp.float32
    D1 = (NUM_CARDS + 1) * H
    n_out = packed["w_heads"].shape[1]

    # fused, lane-aligned activation: [hand_flat(130) | adv(5) | 0-pad] -> (B, 256)
    hand_flat = hand.reshape(B, NUM_CARDS * HAND_FEAT)
    x_in = jnp.concatenate(
        [hand_flat, adv, jnp.zeros((B, K_PAD - FUSED_IN), hand.dtype)],
        axis=1).astype(cd)

    TB = _choose_tb(B)
    B_pad = _round_up(B, TB)
    if B_pad != B:
        x_in = jnp.pad(x_in, ((0, B_pad - B), (0, 0)))
    grid = (B_pad // TB,)

    weights = (packed["w_in"], packed["b_in"], packed["w1"], packed["b1"],
               packed["w2"], packed["b2"], packed["w_heads"], packed["b_heads"])

    # whole-array, single-buffered VMEM residency for every weight/bias
    resident = pl.BlockSpec(memory_space=pltpu.MemorySpace.VMEM)
    in_specs = ([pl.BlockSpec((TB, K_PAD), lambda i: (i, 0))]
                + [resident] * len(weights))
    out_specs = pl.BlockSpec((TB, n_out), lambda i: (i, 0))

    itemsize = jnp.dtype(cd).itemsize
    weight_bytes = sum(int(np.prod(w.shape)) * jnp.dtype(w.dtype).itemsize
                       for w in weights)
    act_bytes = 2 * TB * K_PAD * itemsize + 2 * TB * n_out * 4   # double-buffered
    interm_bytes = 4 * TB * D1 * 4                               # f32 temporaries
    vmem_limit = int(weight_bytes + act_bytes + interm_bytes) + (8 << 20)
    vmem_limit = max(32 << 20, min(vmem_limit, 64 << 20))

    flops = 2 * B_pad * (K_PAD * D1 + D1 * H + H * H + H * n_out)
    bytes_accessed = (B_pad * K_PAD * itemsize + B_pad * n_out * 4 + weight_bytes)

    out = pl.pallas_call(
        actor_critic_kernel,
        grid=grid,
        in_specs=in_specs,
        out_specs=out_specs,
        out_shape=jax.ShapeDtypeStruct((B_pad, n_out), f32),
        compiler_params=pltpu.CompilerParams(
            dimension_semantics=("parallel",),
            vmem_limit_bytes=vmem_limit),
        cost_estimate=pl.CostEstimate(flops=flops, transcendentals=0,
                                      bytes_accessed=bytes_accessed),
    )(x_in, *weights)

    logits = out[:B, :A]
    value = out[:B, A]
    return logits, value


# --------------------------------------------------------------------------- #
# Synthetic parameters + plain-JAX reference mirroring the PyTorch forward.
# --------------------------------------------------------------------------- #
def init_params(key, hidden_dim, action_dim):
    """Deterministic synthetic parameters; weights stored as (in, out)."""
    ks = jax.random.split(key, 12)
    u = lambda k, shape, fan_in: jax.random.uniform(
        k, shape, jnp.float32, -1.0 / np.sqrt(fan_in), 1.0 / np.sqrt(fan_in))
    H, A = hidden_dim, action_dim
    in1 = NUM_CARDS * H + H
    return {
        "w_hand": u(ks[0], (HAND_FEAT, H), HAND_FEAT),
        "b_hand": u(ks[1], (1, H), HAND_FEAT),
        "w_adv": u(ks[2], (HAND_FEAT, H), HAND_FEAT),
        "b_adv": u(ks[3], (1, H), HAND_FEAT),
        "w1": u(ks[4], (in1, H), in1),
        "b1": u(ks[5], (1, H), in1),
        "w2": u(ks[6], (H, H), H),
        "b2": u(ks[7], (1, H), H),
        "w_policy": u(ks[8], (H, A), H),
        "b_policy": u(ks[9], (1, A), H),
        "w_value": u(ks[10], (H, 1), H),
        "b_value": u(ks[11], (1, 1), H),
    }


def reference_forward(hand, adv, p, compute_dtype=jnp.float32):
    """Plain-JAX mirror of the PyTorch forward (MXU operands quantized to
    compute_dtype, f32 accumulation), for correctness checking."""
    f32 = jnp.float32
    q = lambda a: a.astype(compute_dtype).astype(f32)
    B = hand.shape[0]
    hr = jax.nn.relu(jnp.einsum("bnf,fh->bnh", q(hand), q(p["w_hand"]),
                                preferred_element_type=f32) + p["b_hand"][0])
    hr = hr.reshape(B, -1)
    ar = jax.nn.relu(jnp.dot(q(adv), q(p["w_adv"]),
                             preferred_element_type=f32) + p["b_adv"][0])
    x = jnp.concatenate([hr, ar], axis=1)
    x = jax.nn.relu(jnp.dot(q(x), q(p["w1"]),
                            preferred_element_type=f32) + p["b1"][0])
    x = jax.nn.relu(jnp.dot(q(x), q(p["w2"]),
                            preferred_element_type=f32) + p["b2"][0])
    logits = jnp.dot(q(x), q(p["w_policy"]),
                     preferred_element_type=f32) + p["b_policy"][0]
    value = (jnp.dot(q(x), q(p["w_value"]),
                     preferred_element_type=f32) + p["b_value"][0])[:, 0]
    return logits, value


if __name__ == "__main__":
    B, HIDDEN, ACTIONS = 4, 32, 8

    key = jax.random.PRNGKey(0)
    k_hand, k_adv, k_params = jax.random.split(key, 3)

    hand = jax.random.normal(k_hand, (B, NUM_CARDS, HAND_FEAT), jnp.float32)
    adv = jax.random.normal(k_adv, (B, HAND_FEAT), jnp.float32)
    params = init_params(k_params, HIDDEN, ACTIONS)

    # exact f32 path and bf16-MXU path, each checked against a matching reference
    for cd in (jnp.float32, jnp.bfloat16):
        packed = pack_params(params, compute_dtype=cd)   # one-off, hoisted out of forward
        logits, value = actor_critic_forward(hand, adv, packed)
        logits = jax.block_until_ready(logits)
        value = jax.block_until_ready(value)

        ref_logits, ref_value = reference_forward(hand, adv, params,
                                                  compute_dtype=cd)
        assert logits.shape == (B, ACTIONS) and value.shape == (B,)
        assert np.allclose(np.asarray(logits), np.asarray(ref_logits),
                           rtol=2e-3, atol=2e-3), f"logits mismatch ({cd})"
        assert np.allclose(np.asarray(value), np.asarray(ref_value),
                           rtol=2e-3, atol=2e-3), f"value mismatch ({cd})"

    print("KERNEL_OK")
</pallas_src>

<mosaic_0001>
module attributes {stable_mosaic.version = 11 : i64} {
  func.func @actor_critic_kernel(%arg0: i32, %arg1: memref<16x256xf32, #tpu.memory_space<vmem>>, %arg2: memref<256x864xf32, #tpu.memory_space<vmem>>, %arg3: memref<1x864xf32, #tpu.memory_space<vmem>>, %arg4: memref<864x32xf32, #tpu.memory_space<vmem>>, %arg5: memref<1x32xf32, #tpu.memory_space<vmem>>, %arg6: memref<32x32xf32, #tpu.memory_space<vmem>>, %arg7: memref<1x32xf32, #tpu.memory_space<vmem>>, %arg8: memref<32x128xf32, #tpu.memory_space<vmem>>, %arg9: memref<1x128xf32, #tpu.memory_space<vmem>>, %arg10: memref<16x128xf32, #tpu.memory_space<vmem>>) attributes {dimension_semantics = [#tpu.dimension_semantics<parallel>], iteration_bounds = array<i64: 1>, scalar_prefetch = 0 : i64, scratch_operands = 0 : i64, tpu.core_type = #tpu.core_type<tc>, window_params = [{transform_indices = @transform_0, window_bounds = array<i64: 16, 256>}, {pipeline_mode = #tpu.pipeline_mode<synchronous>, transform_indices = @transform_1, window_bounds = array<i64: 256, 864>}, {pipeline_mode = #tpu.pipeline_mode<synchronous>, transform_indices = @transform_2, window_bounds = array<i64: 1, 864>}, {pipeline_mode = #tpu.pipeline_mode<synchronous>, transform_indices = @transform_3, window_bounds = array<i64: 864, 32>}, {pipeline_mode = #tpu.pipeline_mode<synchronous>, transform_indices = @transform_4, window_bounds = array<i64: 1, 32>}, {pipeline_mode = #tpu.pipeline_mode<synchronous>, transform_indices = @transform_5, window_bounds = array<i64: 32, 32>}, {pipeline_mode = #tpu.pipeline_mode<synchronous>, transform_indices = @transform_6, window_bounds = array<i64: 1, 32>}, {pipeline_mode = #tpu.pipeline_mode<synchronous>, transform_indices = @transform_7, window_bounds = array<i64: 32, 128>}, {pipeline_mode = #tpu.pipeline_mode<synchronous>, transform_indices = @transform_8, window_bounds = array<i64: 1, 128>}, {transform_indices = @transform_9, window_bounds = array<i64: 16, 128>}]} {
    %c0 = arith.constant 0 : index
    %c0_0 = arith.constant 0 : index
    %0 = vector.load %arg1[%c0, %c0_0] : memref<16x256xf32, #tpu.memory_space<vmem>>, vector<16x256xf32>
    %c0_1 = arith.constant 0 : index
    %c0_2 = arith.constant 0 : index
    %1 = vector.load %arg2[%c0_1, %c0_2] : memref<256x864xf32, #tpu.memory_space<vmem>>, vector<256x864xf32>
    %cst = arith.constant dense<0.000000e+00> : vector<16x864xf32>
    %2 = tpu.matmul %0, %1, %cst {dimension_numbers = #tpu.dot_dimension_numbers<[1], [0], [0], [1], [0, 0, 1, 1], [], []>} : vector<16x256xf32>, vector<256x864xf32>, vector<16x864xf32> -> vector<16x864xf32>
    %c0_3 = arith.constant 0 : index
    %c0_4 = arith.constant 0 : index
    %3 = vector.load %arg3[%c0_3, %c0_4] : memref<1x864xf32, #tpu.memory_space<vmem>>, vector<1x864xf32>
    %4 = vector.broadcast %3 : vector<1x864xf32> to vector<16x864xf32>
    %5 = arith.addf %2, %4 : vector<16x864xf32>
    %cst_5 = arith.constant 0.000000e+00 : f32
    %6 = vector.broadcast %cst_5 : f32 to vector<16x864xf32>
    %7 = arith.maximumf %5, %6 : vector<16x864xf32>
    %c0_6 = arith.constant 0 : index
    %c0_7 = arith.constant 0 : index
    %8 = vector.load %arg4[%c0_6, %c0_7] : memref<864x32xf32, #tpu.memory_space<vmem>>, vector<864x32xf32>
    %cst_8 = arith.constant dense<0.000000e+00> : vector<16x32xf32>
    %9 = tpu.matmul %7, %8, %cst_8 {dimension_numbers = #tpu.dot_dimension_numbers<[1], [0], [0], [1], [0, 0, 1, 1], [], []>} : vector<16x864xf32>, vector<864x32xf32>, vector<16x32xf32> -> vector<16x32xf32>
    %c0_9 = arith.constant 0 : index
    %c0_10 = arith.constant 0 : index
    %10 = vector.load %arg5[%c0_9, %c0_10] : memref<1x32xf32, #tpu.memory_space<vmem>>, vector<1x32xf32>
    %11 = vector.broadcast %10 : vector<1x32xf32> to vector<16x32xf32>
    %12 = arith.addf %9, %11 : vector<16x32xf32>
    %cst_11 = arith.constant 0.000000e+00 : f32
    %13 = vector.broadcast %cst_11 : f32 to vector<16x32xf32>
    %14 = arith.maximumf %12, %13 : vector<16x32xf32>
    %c0_12 = arith.constant 0 : index
    %c0_13 = arith.constant 0 : index
    %15 = vector.load %arg6[%c0_12, %c0_13] : memref<32x32xf32, #tpu.memory_space<vmem>>, vector<32x32xf32>
    %cst_14 = arith.constant dense<0.000000e+00> : vector<16x32xf32>
    %16 = tpu.matmul %14, %15, %cst_14 {dimension_numbers = #tpu.dot_dimension_numbers<[1], [0], [0], [1], [0, 0, 1, 1], [], []>} : vector<16x32xf32>, vector<32x32xf32>, vector<16x32xf32> -> vector<16x32xf32>
    %c0_15 = arith.constant 0 : index
    %c0_16 = arith.constant 0 : index
    %17 = vector.load %arg7[%c0_15, %c0_16] : memref<1x32xf32, #tpu.memory_space<vmem>>, vector<1x32xf32>
    %18 = vector.broadcast %17 : vector<1x32xf32> to vector<16x32xf32>
    %19 = arith.addf %16, %18 : vector<16x32xf32>
    %cst_17 = arith.constant 0.000000e+00 : f32
    %20 = vector.broadcast %cst_17 : f32 to vector<16x32xf32>
    %21 = arith.maximumf %19, %20 : vector<16x32xf32>
    %c0_18 = arith.constant 0 : index
    %c0_19 = arith.constant 0 : index
    %22 = vector.load %arg8[%c0_18, %c0_19] : memref<32x128xf32, #tpu.memory_space<vmem>>, vector<32x128xf32>
    %cst_20 = arith.constant dense<0.000000e+00> : vector<16x128xf32>
    %23 = tpu.matmul %21, %22, %cst_20 {dimension_numbers = #tpu.dot_dimension_numbers<[1], [0], [0], [1], [0, 0, 1, 1], [], []>} : vector<16x32xf32>, vector<32x128xf32>, vector<16x128xf32> -> vector<16x128xf32>
    %c0_21 = arith.constant 0 : index
    %c0_22 = arith.constant 0 : index
    %24 = vector.load %arg9[%c0_21, %c0_22] : memref<1x128xf32, #tpu.memory_space<vmem>>, vector<1x128xf32>
    %25 = vector.broadcast %24 : vector<1x128xf32> to vector<16x128xf32>
    %26 = arith.addf %23, %25 : vector<16x128xf32>
    %c0_23 = arith.constant 0 : index
    %c0_24 = arith.constant 0 : index
    %27 = vector.load %arg10[%c0_23, %c0_24] : memref<16x128xf32, #tpu.memory_space<vmem>>, vector<16x128xf32>
    tpu.vector_store %arg10[%c0_23, %c0_24], %26 {strides = array<i32>} : memref<16x128xf32, #tpu.memory_space<vmem>>, vector<16x128xf32>,
    return
  }
  func.func @transform_0(%arg0: i32) -> (i32, i32) {
    %c0_i32 = arith.constant 0 : i32
    %c0_i32_0 = arith.constant 0 : i32
    return %arg0, %c0_i32 : i32, i32
  }
  func.func @transform_1(%arg0: i32) -> (i32, i32) {
    %c0_i32 = arith.constant 0 : i32
    %c0_i32_0 = arith.constant 0 : i32
    %c0_i32_1 = arith.constant 0 : i32
    return %c0_i32, %c0_i32_0 : i32, i32
  }
  func.func @transform_2(%arg0: i32) -> (i32, i32) {
    %c0_i32 = arith.constant 0 : i32
    %c0_i32_0 = arith.constant 0 : i32
    %c0_i32_1 = arith.constant 0 : i32
    return %c0_i32, %c0_i32_0 : i32, i32
  }
  func.func @transform_3(%arg0: i32) -> (i32, i32) {
    %c0_i32 = arith.constant 0 : i32
    %c0_i32_0 = arith.constant 0 : i32
    %c0_i32_1 = arith.constant 0 : i32
    return %c0_i32, %c0_i32_0 : i32, i32
  }
  func.func @transform_4(%arg0: i32) -> (i32, i32) {
    %c0_i32 = arith.constant 0 : i32
    %c0_i32_0 = arith.constant 0 : i32
    %c0_i32_1 = arith.constant 0 : i32
    return %c0_i32, %c0_i32_0 : i32, i32
  }
  func.func @transform_5(%arg0: i32) -> (i32, i32) {
    %c0_i32 = arith.constant 0 : i32
    %c0_i32_0 = arith.constant 0 : i32
    %c0_i32_1 = arith.constant 0 : i32
    return %c0_i32, %c0_i32_0 : i32, i32
  }
  func.func @transform_6(%arg0: i32) -> (i32, i32) {
    %c0_i32 = arith.constant 0 : i32
    %c0_i32_0 = arith.constant 0 : i32
    %c0_i32_1 = arith.constant 0 : i32
    return %c0_i32, %c0_i32_0 : i32, i32
  }
  func.func @transform_7(%arg0: i32) -> (i32, i32) {
    %c0_i32 = arith.constant 0 : i32
    %c0_i32_0 = arith.constant 0 : i32
    %c0_i32_1 = arith.constant 0 : i32
    return %c0_i32, %c0_i32_0 : i32, i32
  }
  func.func @transform_8(%arg0: i32) -> (i32, i32) {
    %c0_i32 = arith.constant 0 : i32
    %c0_i32_0 = arith.constant 0 : i32
    %c0_i32_1 = arith.constant 0 : i32
    return %c0_i32, %c0_i32_0 : i32, i32
  }
  func.func @transform_9(%arg0: i32) -> (i32, i32) {
    %c0_i32 = arith.constant 0 : i32
    %c0_i32_0 = arith.constant 0 : i32
    return %arg0, %c0_i32 : i32, i32
  }
}

</mosaic_0001>

<llo_original>
// kernel: tpu_custom_call.1
$region0: #{tpu_custom_call.1}
  #allocation0 [shape = 'u32[]', space=smem, size = 0x4, offset = 0x4, fixed_abs, tag = 'smem constant byte address 0x4 - core index']
  #allocation1 [shape = 'u32[144,128]{1,0:T(1,128)}', space=vmem, size = 0x12000, scoped, tag = 'internal scratch']
  %s0 = inlined_call_operand.vmem [shape: f32[16,256], index: 0, kind: input, shape index: {}]
  %s1 = inlined_call_operand.vmem [shape: f32[256,864], index: 1, kind: input, shape index: {}]
  %s2 = inlined_call_operand.vmem [shape: f32[1,864], index: 2, kind: input, shape index: {}]
  %s3 = inlined_call_operand.vmem [shape: f32[864,32], index: 3, kind: input, shape index: {}]
  %s4 = inlined_call_operand.vmem [shape: f32[1,32], index: 4, kind: input, shape index: {}]
  %s5 = inlined_call_operand.vmem [shape: f32[32,32], index: 5, kind: input, shape index: {}]
  %s6 = inlined_call_operand.vmem [shape: f32[1,32], index: 6, kind: input, shape index: {}]
  %s7 = inlined_call_operand.vmem [shape: f32[32,128], index: 7, kind: input, shape index: {}]
  %s8 = inlined_call_operand.vmem [shape: f32[1,128], index: 8, kind: input, shape index: {}]
  %s9 = inlined_call_operand.hbm [shape: f32[16,128], index: 9, kind: output, shape index: {}]
  %s10 = sld [smem:[#allocation0]]
  $region46: #{tpu_custom_call.1} parent=0
    _
  %s12 = ssub.s32 1, %s10
  %s13 = scalar_select 0, %s12, %s10
  $region1: #{tpu_custom_call.1} parent=0
    #allocation2 [shape = 'u8[8192]{0}', space=vmem, size = 0x2000, scoped, tag = 'output window, operand 0, single buffered']
    #allocation3 [shape = 's32[1]{0}', space=sflag, size = 0x4, scoped, tag = 'scoped memory for tpu_custom_call.1']
    %14 = vsyncpa [#allocation3], 0
    // Predicated region
    $region2: #{tpu_custom_call.1} parent=1 // pred_check
      _
    $region3: #{tpu_custom_call.1} parent=1 // pred_check_branch
      %16 = sbr.rel (0) target = $region5
    $region4: #{tpu_custom_call.1} parent=1 // pred_region
      _
    $region5: #{tpu_custom_call.1} parent=1 // pred_fallthru
      _
    // Predicated region
    $region6: #{tpu_custom_call.1} parent=1 // pred_check
      _
    $region7: #{tpu_custom_call.1} parent=1 // pred_check_branch
      %18 = sbr.rel (0) target = $region9
    $region8: #{tpu_custom_call.1} parent=1 // pred_region
      _
    $region9: #{tpu_custom_call.1} parent=1 // pred_fallthru
      _
    // Predicated region
    $region10: #{tpu_custom_call.1} parent=1 // pred_check
      _
    $region11: #{tpu_custom_call.1} parent=1 // pred_check_branch
      %20 = sbr.rel (0) target = $region13
    $region12: #{tpu_custom_call.1} parent=1 // pred_region
      _
    $region13: #{tpu_custom_call.1} parent=1 // pred_fallthru
      _
    // Predicated region
    $region14: #{tpu_custom_call.1} parent=1 // pred_check
      _
    $region15: #{tpu_custom_call.1} parent=1 // pred_check_branch
      %22 = sbr.rel (0) target = $region17
    $region16: #{tpu_custom_call.1} parent=1 // pred_region
      _
    $region17: #{tpu_custom_call.1} parent=1 // pred_fallthru
      _
    // Predicated region
    $region18: #{tpu_custom_call.1} parent=1 // pred_check
      _
    $region19: #{tpu_custom_call.1} parent=1 // pred_check_branch
      %24 = sbr.rel (0) target = $region21
    $region20: #{tpu_custom_call.1} parent=1 // pred_region
      _
    $region21: #{tpu_custom_call.1} parent=1 // pred_fallthru
      _
    // Predicated region
    $region22: #{tpu_custom_call.1} parent=1 // pred_check
      _
    $region23: #{tpu_custom_call.1} parent=1 // pred_check_branch
      %26 = sbr.rel (0) target = $region25
    $region24: #{tpu_custom_call.1} parent=1 // pred_region
      _
    $region25: #{tpu_custom_call.1} parent=1 // pred_fallthru
      _
    // Predicated region
    $region26: #{tpu_custom_call.1} parent=1 // pred_check
      _
    $region27: #{tpu_custom_call.1} parent=1 // pred_check_branch
      %28 = sbr.rel (0) target = $region29
    $region28: #{tpu_custom_call.1} parent=1 // pred_region
      _
    $region29: #{tpu_custom_call.1} parent=1 // pred_fallthru
      _
    // Predicated region
    $region30: #{tpu_custom_call.1} parent=1 // pred_check
      _
    $region31: #{tpu_custom_call.1} parent=1 // pred_check_branch
      %30 = sbr.rel (0) target = $region33
    $region32: #{tpu_custom_call.1} parent=1 // pred_region
      _
    $region33: #{tpu_custom_call.1} parent=1 // pred_fallthru
      _
    // Predicated region
    $region34: #{tpu_custom_call.1} parent=1 // pred_check
      _
    $region35: #{tpu_custom_call.1} parent=1 // pred_check_branch
      %32 = sbr.rel (0) target = $region37
    $region36: #{tpu_custom_call.1} parent=1 // pred_region
      _
    $region37: #{tpu_custom_call.1} parent=1 // pred_fallthru
      _
    %v33 = vld [vmem:[%s0] sm:$0xff]
    %v34 = vld [vmem:[%s0 + $0x8] sm:$0xff]
    %v35 = vld [vmem:[%s0 + $0x10] sm:$0xff]
    %v36 = vld [vmem:[%s0 + $0x18] sm:$0xff]
    %v37 = vld [vmem:[%s1] sm:$0xff]
    %v38 = vld [vmem:[%s1 + $0x8] sm:$0xff]
    %v39 = vld [vmem:[%s1 + $0x10] sm:$0xff]
    %v40 = vld [vmem:[%s1 + $0x18] sm:$0xff]
    %v41 = vld [vmem:[%s1 + $0x20] sm:$0xff]
    %v42 = vld [vmem:[%s1 + $0x28] sm:$0xff]
    %v43 = vld [vmem:[%s1 + $0x30] sm:$0xff]
    %v44 = vld [vmem:[%s1 + $0x38] sm:$0xff]
    %v45 = vld [vmem:[%s1 + $0x40] sm:$0xff]
    %v46 = vld [vmem:[%s1 + $0x48] sm:$0xff]
    %v47 = vld [vmem:[%s1 + $0x50] sm:$0xff]
    %v48 = vld [vmem:[%s1 + $0x58] sm:$0xff]
    %v49 = vld [vmem:[%s1 + $0x60] sm:$0xff]
    %v50 = vld [vmem:[%s1 + $0x68] sm:$0xff]
    %v51 = vld [vmem:[%s1 + $0x70] sm:$0xff]
    %v52 = vld [vmem:[%s1 + $0x78] sm:$0xff]
    %v53 = vld [vmem:[%s1 + $0x80] sm:$0xff]
    %v54 = vld [vmem:[%s1 + $0x88] sm:$0xff]
    %v55 = vld [vmem:[%s1 + $0x90] sm:$0xff]
    %v56 = vld [vmem:[%s1 + $0x98] sm:$0xff]
    %v57 = vld [vmem:[%s1 + $0xa0] sm:$0xff]
    %v58 = vld [vmem:[%s1 + $0xa8] sm:$0xff]
    %v59 = vld [vmem:[%s1 + $0xb0] sm:$0xff]
    %v60 = vld [vmem:[%s1 + $0xb8] sm:$0xff]
    %v61 = vld [vmem:[%s1 + $0xc0] sm:$0xff]
    %v62 = vld [vmem:[%s1 + $0xc8] sm:$0xff]
    %v63 = vld [vmem:[%s1 + $0xd0] sm:$0xff]
    %v64 = vld [vmem:[%s1 + $0xd8] sm:$0xff]
    %v65 = vld [vmem:[%s1 + $0xe0] sm:$0xff]
    %v66 = vld [vmem:[%s1 + $0xe8] sm:$0xff]
    %v67 = vld [vmem:[%s1 + $0xf0] sm:$0xff]
    %v68 = vld [vmem:[%s1 + $0xf8] sm:$0xff]
    %v69 = vld [vmem:[%s1 + $0x100] sm:$0xff]
    %v70 = vld [vmem:[%s1 + $0x108] sm:$0xff]
    %v71 = vld [vmem:[%s1 + $0x110] sm:$0xff]
    %v72 = vld [vmem:[%s1 + $0x118] sm:$0xff]
    %v73 = vld [vmem:[%s1 + $0x120] sm:$0xff]
    %v74 = vld [vmem:[%s1 + $0x128] sm:$0xff]
    %v75 = vld [vmem:[%s1 + $0x130] sm:$0xff]
    %v76 = vld [vmem:[%s1 + $0x138] sm:$0xff]
    %v77 = vld [vmem:[%s1 + $0x140] sm:$0xff]
    %v78 = vld [vmem:[%s1 + $0x148] sm:$0xff]
    %v79 = vld [vmem:[%s1 + $0x150] sm:$0xff]
    %v80 = vld [vmem:[%s1 + $0x158] sm:$0xff]
    %v81 = vld [vmem:[%s1 + $0x160] sm:$0xff]
    %v82 = vld [vmem:[%s1 + $0x168] sm:$0xff]
    %v83 = vld [vmem:[%s1 + $0x170] sm:$0xff]
    %v84 = vld [vmem:[%s1 + $0x178] sm:$0xff]
    %v85 = vld [vmem:[%s1 + $0x180] sm:$0xff]
    %v86 = vld [vmem:[%s1 + $0x188] sm:$0xff]
    %v87 = vld [vmem:[%s1 + $0x190] sm:$0xff]
    %v88 = vld [vmem:[%s1 + $0x198] sm:$0xff]
    %v89 = vld [vmem:[%s1 + $0x1a0] sm:$0xff]
    %v90 = vld [vmem:[%s1 + $0x1a8] sm:$0xff]
    %v91 = vld [vmem:[%s1 + $0x1b0] sm:$0xff]
    %v92 = vld [vmem:[%s1 + $0x1b8] sm:$0xff]
    %v93 = vld [vmem:[%s1 + $0x1c0] sm:$0xff]
    %v94 = vld [vmem:[%s1 + $0x1c8] sm:$0xff]
    %v95 = vld [vmem:[%s1 + $0x1d0] sm:$0xff]
    %v96 = vld [vmem:[%s1 + $0x1d8] sm:$0xff]
    %v97 = vld [vmem:[%s1 + $0x1e0] sm:$0xff]
    %v98 = vld [vmem:[%s1 + $0x1e8] sm:$0xff]
    %v99 = vld [vmem:[%s1 + $0x1f0] sm:$0xff]
    %v100 = vld [vmem:[%s1 + $0x1f8] sm:$0xff]
    %v101 = vld [vmem:[%s1 + $0x200] sm:$0xff]
    %v102 = vld [vmem:[%s1 + $0x208] sm:$0xff]
    %v103 = vld [vmem:[%s1 + $0x210] sm:$0xff]
    %v104 = vld [vmem:[%s1 + $0x218] sm:$0xff]
    %v105 = vld [vmem:[%s1 + $0x220] sm:$0xff]
    %v106 = vld [vmem:[%s1 + $0x228] sm:$0xff]
    %v107 = vld [vmem:[%s1 + $0x230] sm:$0xff]
    %v108 = vld [vmem:[%s1 + $0x238] sm:$0xff]
    %v109 = vld [vmem:[%s1 + $0x240] sm:$0xff]
    %v110 = vld [vmem:[%s1 + $0x248] sm:$0xff]
    %v111 = vld [vmem:[%s1 + $0x250] sm:$0xff]
    %v112 = vld [vmem:[%s1 + $0x258] sm:$0xff]
    %v113 = vld [vmem:[%s1 + $0x260] sm:$0xff]
    %v114 = vld [vmem:[%s1 + $0x268] sm:$0xff]
    %v115 = vld [vmem:[%s1 + $0x270] sm:$0xff]
    %v116 = vld [vmem:[%s1 + $0x278] sm:$0xff]
    %v117 = vld [vmem:[%s1 + $0x280] sm:$0xff]
    %v118 = vld [vmem:[%s1 + $0x288] sm:$0xff]
    %v119 = vld [vmem:[%s1 + $0x290] sm:$0xff]
    %v120 = vld [vmem:[%s1 + $0x298] sm:$0xff]
    %v121 = vld [vmem:[%s1 + $0x2a0] sm:$0xff]
    %v122 = vld [vmem:[%s1 + $0x2a8] sm:$0xff]
    %v123 = vld [vmem:[%s1 + $0x2b0] sm:$0xff]
    %v124 = vld [vmem:[%s1 + $0x2b8] sm:$0xff]
    %v125 = vld [vmem:[%s1 + $0x2c0] sm:$0xff]
    %v126 = vld [vmem:[%s1 + $0x2c8] sm:$0xff]
    %v127 = vld [vmem:[%s1 + $0x2d0] sm:$0xff]
    %v128 = vld [vmem:[%s1 + $0x2d8] sm:$0xff]
    %v129 = vld [vmem:[%s1 + $0x2e0] sm:$0xff]
    %v130 = vld [vmem:[%s1 + $0x2e8] sm:$0xff]
    %v131 = vld [vmem:[%s1 + $0x2f0] sm:$0xff]
    %v132 = vld [vmem:[%s1 + $0x2f8] sm:$0xff]
    %v133 = vld [vmem:[%s1 + $0x300] sm:$0xff]
    %v134 = vld [vmem:[%s1 + $0x308] sm:$0xff]
    %v135 = vld [vmem:[%s1 + $0x310] sm:$0xff]
    %v136 = vld [vmem:[%s1 + $0x318] sm:$0xff]
    %v137 = vld [vmem:[%s1 + $0x320] sm:$0xff]
    %v138 = vld [vmem:[%s1 + $0x328] sm:$0xff]
    %v139 = vld [vmem:[%s1 + $0x330] sm:$0xff]
    %v140 = vld [vmem:[%s1 + $0x338] sm:$0xff]
    %v141 = vld [vmem:[%s1 + $0x340] sm:$0xff]
    %v142 = vld [vmem:[%s1 + $0x348] sm:$0xff]
    %v143 = vld [vmem:[%s1 + $0x350] sm:$0xff]
    %v144 = vld [vmem:[%s1 + $0x358] sm:$0xff]
    %v145 = vld [vmem:[%s1 + $0x360] sm:$0xff]
    %v146 = vld [vmem:[%s1 + $0x368] sm:$0xff]
    %v147 = vld [vmem:[%s1 + $0x370] sm:$0xff]
    %v148 = vld [vmem:[%s1 + $0x378] sm:$0xff]
    %v149 = vld [vmem:[%s1 + $0x380] sm:$0xff]
    %v150 = vld [vmem:[%s1 + $0x388] sm:$0xff]
    %v151 = vld [vmem:[%s1 + $0x390] sm:$0xff]
    %v152 = vld [vmem:[%s1 + $0x398] sm:$0xff]
    %v153 = vld [vmem:[%s1 + $0x3a0] sm:$0xff]
    %v154 = vld [vmem:[%s1 + $0x3a8] sm:$0xff]
    %v155 = vld [vmem:[%s1 + $0x3b0] sm:$0xff]
    %v156 = vld [vmem:[%s1 + $0x3b8] sm:$0xff]
    %v157 = vld [vmem:[%s1 + $0x3c0] sm:$0xff]
    %v158 = vld [vmem:[%s1 + $0x3c8] sm:$0xff]
    %v159 = vld [vmem:[%s1 + $0x3d0] sm:$0xff]
    %v160 = vld [vmem:[%s1 + $0x3d8] sm:$0xff]
    %v161 = vld [vmem:[%s1 + $0x3e0] sm:$0xff]
    %v162 = vld [vmem:[%s1 + $0x3e8] sm:$0xff]
    %v163 = vld [vmem:[%s1 + $0x3f0] sm:$0xff]
    %v164 = vld [vmem:[%s1 + $0x3f8] sm:$0xff]
    %v165 = vld [vmem:[%s1 + $0x400] sm:$0xff]
    %v166 = vld [vmem:[%s1 + $0x408] sm:$0xff]
    %v167 = vld [vmem:[%s1 + $0x410] sm:$0xff]
    %v168 = vld [vmem:[%s1 + $0x418] sm:$0xff]
    %v169 = vld [vmem:[%s1 + $0x420] sm:$0xff]
    %v170 = vld [vmem:[%s1 + $0x428] sm:$0xff]
    %v171 = vld [vmem:[%s1 + $0x430] sm:$0xff]
    %v172 = vld [vmem:[%s1 + $0x438] sm:$0xff]
    %v173 = vld [vmem:[%s1 + $0x440] sm:$0xff]
    %v174 = vld [vmem:[%s1 + $0x448] sm:$0xff]
    %v175 = vld [vmem:[%s1 + $0x450] sm:$0xff]
    %v176 = vld [vmem:[%s1 + $0x458] sm:$0xff]
    %v177 = vld [vmem:[%s1 + $0x460] sm:$0xff]
    %v178 = vld [vmem:[%s1 + $0x468] sm:$0xff]
    %v179 = vld [vmem:[%s1 + $0x470] sm:$0xff]
    %v180 = vld [vmem:[%s1 + $0x478] sm:$0xff]
    %v181 = vld [vmem:[%s1 + $0x480] sm:$0xff]
    %v182 = vld [vmem:[%s1 + $0x488] sm:$0xff]
    %v183 = vld [vmem:[%s1 + $0x490] sm:$0xff]
    %v184 = vld [vmem:[%s1 + $0x498] sm:$0xff]
    %v185 = vld [vmem:[%s1 + $0x4a0] sm:$0xff]
    %v186 = vld [vmem:[%s1 + $0x4a8] sm:$0xff]
    %v187 = vld [vmem:[%s1 + $0x4b0] sm:$0xff]
    %v188 = vld [vmem:[%s1 + $0x4b8] sm:$0xff]
    %v189 = vld [vmem:[%s1 + $0x4c0] sm:$0xff]
    %v190 = vld [vmem:[%s1 + $0x4c8] sm:$0xff]
    %v191 = vld [vmem:[%s1 + $0x4d0] sm:$0xff]
    %v192 = vld [vmem:[%s1 + $0x4d8] sm:$0xff]
    %v193 = vld [vmem:[%s1 + $0x4e0] sm:$0xff]
    %v194 = vld [vmem:[%s1 + $0x4e8] sm:$0xff]
    %v195 = vld [vmem:[%s1 + $0x4f0] sm:$0xff]
    %v196 = vld [vmem:[%s1 + $0x4f8] sm:$0xff]
    %v197 = vld [vmem:[%s1 + $0x500] sm:$0xff]
    %v198 = vld [vmem:[%s1 + $0x508] sm:$0xff]
    %v199 = vld [vmem:[%s1 + $0x510] sm:$0xff]
    %v200 = vld [vmem:[%s1 + $0x518] sm:$0xff]
    %v201 = vld [vmem:[%s1 + $0x520] sm:$0xff]
    %v202 = vld [vmem:[%s1 + $0x528] sm:$0xff]
    %v203 = vld [vmem:[%s1 + $0x530] sm:$0xff]
    %v204 = vld [vmem:[%s1 + $0x538] sm:$0xff]
    %v205 = vld [vmem:[%s1 + $0x540] sm:$0xff]
    %v206 = vld [vmem:[%s1 + $0x548] sm:$0xff]
    %v207 = vld [vmem:[%s1 + $0x550] sm:$0xff]
    %v208 = vld [vmem:[%s1 + $0x558] sm:$0xff]
    %v209 = vld [vmem:[%s1 + $0x560] sm:$0xff]
    %v210 = vld [vmem:[%s1 + $0x568] sm:$0xff]
    %v211 = vld [vmem:[%s1 + $0x570] sm:$0xff]
    %v212 = vld [vmem:[%s1 + $0x578] sm:$0xff]
    %v213 = vld [vmem:[%s1 + $0x580] sm:$0xff]
    %v214 = vld [vmem:[%s1 + $0x588] sm:$0xff]
    %v215 = vld [vmem:[%s1 + $0x590] sm:$0xff]
    %v216 = vld [vmem:[%s1 + $0x598] sm:$0xff]
    %v217 = vld [vmem:[%s1 + $0x5a0] sm:$0xff]
    %v218 = vld [vmem:[%s1 + $0x5a8] sm:$0xff]
    %v219 = vld [vmem:[%s1 + $0x5b0] sm:$0xff]
    %v220 = vld [vmem:[%s1 + $0x5b8] sm:$0xff]
    %v221 = vld [vmem:[%s1 + $0x5c0] sm:$0xff]
    %v222 = vld [vmem:[%s1 + $0x5c8] sm:$0xff]
    %v223 = vld [vmem:[%s1 + $0x5d0] sm:$0xff]
    %v224 = vld [vmem:[%s1 + $0x5d8] sm:$0xff]
    %v225 = vld [vmem:[%s1 + $0x5e0] sm:$0xff]
    %v226 = vld [vmem:[%s1 + $0x5e8] sm:$0xff]
    %v227 = vld [vmem:[%s1 + $0x5f0] sm:$0xff]
    %v228 = vld [vmem:[%s1 + $0x5f8] sm:$0xff]
    %v229 = vld [vmem:[%s1 + $0x600] sm:$0xff]
    %v230 = vld [vmem:[%s1 + $0x608] sm:$0xff]
    %v231 = vld [vmem:[%s1 + $0x610] sm:$0xff]
    %v232 = vld [vmem:[%s1 + $0x618] sm:$0xff]
    %v233 = vld [vmem:[%s1 + $0x620] sm:$0xff]
    %v234 = vld [vmem:[%s1 + $0x628] sm:$0xff]
    %v235 = vld [vmem:[%s1 + $0x630] sm:$0xff]
    %v236 = vld [vmem:[%s1 + $0x638] sm:$0xff]
    %v237 = vld [vmem:[%s1 + $0x640] sm:$0xff]
    %v238 = vld [vmem:[%s1 + $0x648] sm:$0xff]
    %v239 = vld [vmem:[%s1 + $0x650] sm:$0xff]
    %v240 = vld [vmem:[%s1 + $0x658] sm:$0xff]
    %v241 = vld [vmem:[%s1 + $0x660] sm:$0xff]
    %v242 = vld [vmem:[%s1 + $0x668] sm:$0xff]
    %v243 = vld [vmem:[%s1 + $0x670] sm:$0xff]
    %v244 = vld [vmem:[%s1 + $0x678] sm:$0xff]
    %v245 = vld [vmem:[%s1 + $0x680] sm:$0xff]
    %v246 = vld [vmem:[%s1 + $0x688] sm:$0xff]
    %v247 = vld [vmem:[%s1 + $0x690] sm:$0xff]
    %v248 = vld [vmem:[%s1 + $0x698] sm:$0xff]
    %v249 = vld [vmem:[%s1 + $0x6a0] sm:$0xff]
    %v250 = vld [vmem:[%s1 + $0x6a8] sm:$0xff]
    %v251 = vld [vmem:[%s1 + $0x6b0] sm:$0xff]
    %v252 = vld [vmem:[%s1 + $0x6b8] sm:$0xff]
    %v253 = vld [vmem:[%s1 + $0x6c0] sm:$0xff]
    %v254 = vld [vmem:[%s1 + $0x6c8] sm:$0xff]
    %v255 = vld [vmem:[%s1 + $0x6d0] sm:$0xff]
    %v256 = vld [vmem:[%s1 + $0x6d8] sm:$0xff]
    %v257 = vld [vmem:[%s1 + $0x6e0] sm:$0xff]
    %v258 = vld [vmem:[%s1 + $0x6e8] sm:$0xff]
    %v259 = vld [vmem:[%s1 + $0x6f0] sm:$0xff]
    %v260 = vld [vmem:[%s1 + $0x6f8] sm:$0xff]
    %v261 = vld [vmem:[%s2] sm:$0x7f]
    %v263 = vlaneseq
    %v264 = vshrl.u32 %v263, 7
    %v265 = vsub.s32 0, %v264
    %v266 = vrot.slane %v261, %v265
    %v267 = vlaneseq
    %v268 = vshrl.u32 %v267, 7
    %v269 = vsub.s32 1, %v268
    %v270 = vrot.slane %v261, %v269
    %v271 = vlaneseq
    %v272 = vshrl.u32 %v271, 7
    %v273 = vsub.s32 2, %v272
    %v274 = vrot.slane %v261, %v273
    %v275 = vlaneseq
    %v276 = vshrl.u32 %v275, 7
    %v277 = vsub.s32 3, %v276
    %v278 = vrot.slane %v261, %v277
    %v279 = vlaneseq
    %v280 = vshrl.u32 %v279, 7
    %v281 = vsub.s32 4, %v280
    %v282 = vrot.slane %v261, %v281
    %v283 = vlaneseq
    %v284 = vshrl.u32 %v283, 7
    %v285 = vsub.s32 5, %v284
    %v286 = vrot.slane %v261, %v285
    %v287 = vlaneseq
    %v288 = vshrl.u32 %v287, 7
    %v289 = vsub.s32 6, %v288
    %v290 = vrot.slane %v261, %v289
    %298 = vmatprep.subr.mxu0 %v38
    %299 = vmatpush1.msra.mxu0 %v37
    %300 = vmatprep.subr.mxu0 %v45
    %301 = vmatpush1.msra.mxu0 %v44
    %302 = vmatprep.subr.mxu0 %v52
    %303 = vmatpush1.msra.mxu0 %v51
    %304 = vmatprep.subr.mxu0 %v59
    %305 = vmatpush1.msra.mxu0 %v58
    %306 = vmatprep.subr.mxu0 %v66
    %307 = vmatpush1.msra.mxu0 %v65
    %308 = vmatprep.subr.mxu0 %v73
    %309 = vmatpush1.msra.mxu0 %v72
    %310 = vmatprep.subr.mxu0 %v80
    %311 = vmatpush1.msra.mxu0 %v79
    %312 = vmatprep.subr.mxu0 %v87
    %313 = vmatpush1.msra.mxu0 %v86
    %314 = vmatprep.subr.mxu0 %v94
    %315 = vmatpush1.msra.mxu0 %v93
    %316 = vmatprep.subr.mxu0 %v101
    %317 = vmatpush1.msra.mxu0 %v100
    %318 = vmatprep.subr.mxu0 %v108
    %319 = vmatpush1.msra.mxu0 %v107
    %320 = vmatprep.subr.mxu0 %v115
    %321 = vmatpush1.msra.mxu0 %v114
    %322 = vmatprep.subr.mxu0 %v122
    %323 = vmatpush1.msra.mxu0 %v121
    %324 = vmatprep.subr.mxu0 %v129
    %325 = vmatpush1.msra.mxu0 %v128
    %326 = vmatprep.subr.mxu0 %v136
    %327 = vmatpush1.msra.mxu0 %v135
    %328 = vmatprep.subr.mxu0 %v143
    %329 = vmatpush1.msra.mxu0 %v142
    %330 = vmatprep.subr.mxu0 %v150
    %331 = vmatpush1.msra.mxu0 %v149
    %332 = vmatprep.subr.mxu0 %v157
    %333 = vmatpush1.msra.mxu0 %v156
    %334 = vmatprep.subr.mxu0 %v164
    %335 = vmatpush1.msra.mxu0 %v163
    %336 = vmatprep.subr.mxu0 %v171
    %337 = vmatpush1.msra.mxu0 %v170
    %338 = vmatprep.subr.mxu0 %v178
    %339 = vmatpush1.msra.mxu0 %v177
    %340 = vmatprep.subr.mxu0 %v185
    %341 = vmatpush1.msra.mxu0 %v184
    %342 = vmatprep.subr.mxu0 %v192
    %343 = vmatpush1.msra.mxu0 %v191
    %344 = vmatprep.subr.mxu0 %v199
    %345 = vmatpush1.msra.mxu0 %v198
    %346 = vmatprep.subr.mxu0 %v206
    %347 = vmatpush1.msra.mxu0 %v205
    %348 = vmatprep.subr.mxu0 %v213
    %349 = vmatpush1.msra.mxu0 %v212
    %350 = vmatprep.subr.mxu0 %v220
    %351 = vmatpush1.msra.mxu0 %v219
    %352 = vmatprep.subr.mxu0 %v227
    %353 = vmatpush1.msra.mxu0 %v226
    %354 = vmatprep.subr.mxu0 %v234
    %355 = vmatpush1.msra.mxu0 %v233
    %356 = vmatprep.subr.mxu0 %v241
    %357 = vmatpush1.msra.mxu0 %v240
    %358 = vmatprep.subr.mxu0 %v248
    %359 = vmatpush1.msra.mxu0 %v247
    %360 = vmatprep.subr.mxu0 %v255
    %361 = vmatpush1.msra.mxu0 %v254
    %362 = vmatprep.mubr.f32.mxu0 %v34
    %363 = vmatmul.mubr.f32.gmra.mrb[0].mxu0 %v33
    %v364 = vpop.f32.mrb[0].mxu0
    %v365 = vadd.f32 %v266, %v364
    %v366 = vpop.f32.mrb[0].mxu0
    %v367 = vadd.f32 %v270, %v366
    %368 = vmatprep.mubr.f32.mxu0 %v36
    %369 = vmatmul.mubr.f32.gmra.mrb[0].mxu0 %v35
    %v370 = vpop.f32.mrb[0].mxu0
    %v371 = vadd.f32 %v266, %v370
    %v372 = vpop.f32.mrb[0].mxu0
    %v373 = vadd.f32 %v270, %v372
    %374 = vdwg.mxu0
    %375 = vmatprep.subr.mxu0 %v40
    %376 = vmatpush1.msra.mxu0 %v39
    %377 = vmatprep.subr.mxu0 %v47
    %378 = vmatpush1.msra.mxu0 %v46
    %379 = vmatprep.subr.mxu0 %v54
    %380 = vmatpush1.msra.mxu0 %v53
    %381 = vmatprep.subr.mxu0 %v61
    %382 = vmatpush1.msra.mxu0 %v60
    %383 = vmatprep.subr.mxu0 %v68
    %384 = vmatpush1.msra.mxu0 %v67
    %385 = vmatprep.subr.mxu0 %v75
    %386 = vmatpush1.msra.mxu0 %v74
    %387 = vmatprep.subr.mxu0 %v82
    %388 = vmatpush1.msra.mxu0 %v81
    %389 = vmatprep.subr.mxu0 %v89
    %390 = vmatpush1.msra.mxu0 %v88
    %391 = vmatprep.subr.mxu0 %v96
    %392 = vmatpush1.msra.mxu0 %v95
    %393 = vmatprep.subr.mxu0 %v103
    %394 = vmatpush1.msra.mxu0 %v102
    %395 = vmatprep.subr.mxu0 %v110
    %396 = vmatpush1.msra.mxu0 %v109
    %397 = vmatprep.subr.mxu0 %v117
    %398 = vmatpush1.msra.mxu0 %v116
    %399 = vmatprep.subr.mxu0 %v124
    %400 = vmatpush1.msra.mxu0 %v123
    %401 = vmatprep.subr.mxu0 %v131
    %402 = vmatpush1.msra.mxu0 %v130
    %403 = vmatprep.subr.mxu0 %v138
    %404 = vmatpush1.msra.mxu0 %v137
    %405 = vmatprep.subr.mxu0 %v145
    %406 = vmatpush1.msra.mxu0 %v144
    %407 = vmatprep.subr.mxu0 %v152
    %408 = vmatpush1.msra.mxu0 %v151
    %409 = vmatprep.subr.mxu0 %v159
    %410 = vmatpush1.msra.mxu0 %v158
    %411 = vmatprep.subr.mxu0 %v166
    %412 = vmatpush1.msra.mxu0 %v165
    %413 = vmatprep.subr.mxu0 %v173
    %414 = vmatpush1.msra.mxu0 %v172
    %415 = vmatprep.subr.mxu0 %v180
    %416 = vmatpush1.msra.mxu0 %v179
    %417 = vmatprep.subr.mxu0 %v187
    %418 = vmatpush1.msra.mxu0 %v186
    %419 = vmatprep.subr.mxu0 %v194
    %420 = vmatpush1.msra.mxu0 %v193
    %421 = vmatprep.subr.mxu0 %v201
    %422 = vmatpush1.msra.mxu0 %v200
    %423 = vmatprep.subr.mxu0 %v208
    %424 = vmatpush1.msra.mxu0 %v207
    %425 = vmatprep.subr.mxu0 %v215
    %426 = vmatpush1.msra.mxu0 %v214
    %427 = vmatprep.subr.mxu0 %v222
    %428 = vmatpush1.msra.mxu0 %v221
    %429 = vmatprep.subr.mxu0 %v229
    %430 = vmatpush1.msra.mxu0 %v228
    %431 = vmatprep.subr.mxu0 %v236
    %432 = vmatpush1.msra.mxu0 %v235
    %433 = vmatprep.subr.mxu0 %v243
    %434 = vmatpush1.msra.mxu0 %v242
    %435 = vmatprep.subr.mxu0 %v250
    %436 = vmatpush1.msra.mxu0 %v249
    %437 = vmatprep.subr.mxu0 %v257
    %438 = vmatpush1.msra.mxu0 %v256
    %439 = vmatprep.mubr.f32.mxu0 %v34
    %440 = vmatmul.mubr.f32.gmra.mrb[0].mxu0 %v33
    %v441 = vpop.f32.mrb[0].mxu0
    %v442 = vadd.f32 %v274, %v441
    %v443 = vpop.f32.mrb[0].mxu0
    %v444 = vadd.f32 %v278, %v443
    %445 = vmatprep.mubr.f32.mxu0 %v36
    %446 = vmatmul.mubr.f32.gmra.mrb[0].mxu0 %v35
    %v447 = vpop.f32.mrb[0].mxu0
    %v448 = vadd.f32 %v274, %v447
    %v449 = vpop.f32.mrb[0].mxu0
    %v450 = vadd.f32 %v278, %v449
    %451 = vdwg.mxu0
    %452 = vmatprep.subr.mxu0 %v42
    %453 = vmatpush1.msra.mxu0 %v41
    %454 = vmatprep.subr.mxu0 %v49
    %455 = vmatpush1.msra.mxu0 %v48
    %456 = vmatprep.subr.mxu0 %v56
    %457 = vmatpush1.msra.mxu0 %v55
    %458 = vmatprep.subr.mxu0 %v63
    %459 = vmatpush1.msra.mxu0 %v62
    %460 = vmatprep.subr.mxu0 %v70
    %461 = vmatpush1.msra.mxu0 %v69
    %462 = vmatprep.subr.mxu0 %v77
    %463 = vmatpush1.msra.mxu0 %v76
    %464 = vmatprep.subr.mxu0 %v84
    %465 = vmatpush1.msra.mxu0 %v83
    %466 = vmatprep.subr.mxu0 %v91
    %467 = vmatpush1.msra.mxu0 %v90
    %468 = vmatprep.subr.mxu0 %v98
    %469 = vmatpush1.msra.mxu0 %v97
    %470 = vmatprep.subr.mxu0 %v105
    %471 = vmatpush1.msra.mxu0 %v104
    %472 = vmatprep.subr.mxu0 %v112
    %473 = vmatpush1.msra.mxu0 %v111
    %474 = vmatprep.subr.mxu0 %v119
    %475 = vmatpush1.msra.mxu0 %v118
    %476 = vmatprep.subr.mxu0 %v126
    %477 = vmatpush1.msra.mxu0 %v125
    %478 = vmatprep.subr.mxu0 %v133
    %479 = vmatpush1.msra.mxu0 %v132
    %480 = vmatprep.subr.mxu0 %v140
    %481 = vmatpush1.msra.mxu0 %v139
    %482 = vmatprep.subr.mxu0 %v147
    %483 = vmatpush1.msra.mxu0 %v146
    %484 = vmatprep.subr.mxu0 %v154
    %485 = vmatpush1.msra.mxu0 %v153
    %486 = vmatprep.subr.mxu0 %v161
    %487 = vmatpush1.msra.mxu0 %v160
    %488 = vmatprep.subr.mxu0 %v168
    %489 = vmatpush1.msra.mxu0 %v167
    %490 = vmatprep.subr.mxu0 %v175
    %491 = vmatpush1.msra.mxu0 %v174
    %492 = vmatprep.subr.mxu0 %v182
    %493 = vmatpush1.msra.mxu0 %v181
    %494 = vmatprep.subr.mxu0 %v189
    %495 = vmatpush1.msra.mxu0 %v188
    %496 = vmatprep.subr.mxu0 %v196
    %497 = vmatpush1.msra.mxu0 %v195
    %498 = vmatprep.subr.mxu0 %v203
    %499 = vmatpush1.msra.mxu0 %v202
    %500 = vmatprep.subr.mxu0 %v210
    %501 = vmatpush1.msra.mxu0 %v209
    %502 = vmatprep.subr.mxu0 %v217
    %503 = vmatpush1.msra.mxu0 %v216
    %504 = vmatprep.subr.mxu0 %v224
    %505 = vmatpush1.msra.mxu0 %v223
    %506 = vmatprep.subr.mxu0 %v231
    %507 = vmatpush1.msra.mxu0 %v230
    %508 = vmatprep.subr.mxu0 %v238
    %509 = vmatpush1.msra.mxu0 %v237
    %510 = vmatprep.subr.mxu0 %v245
    %511 = vmatpush1.msra.mxu0 %v244
    %512 = vmatprep.subr.mxu0 %v252
    %513 = vmatpush1.msra.mxu0 %v251
    %514 = vmatprep.subr.mxu0 %v259
    %515 = vmatpush1.msra.mxu0 %v258
    %516 = vmatprep.mubr.f32.mxu0 %v34
    %517 = vmatmul.mubr.f32.gmra.mrb[0].mxu0 %v33
    %v518 = vpop.f32.mrb[0].mxu0
    %v519 = vadd.f32 %v282, %v518
    %v520 = vpop.f32.mrb[0].mxu0
    %v521 = vadd.f32 %v286, %v520
    %522 = vmatprep.mubr.f32.mxu0 %v36
    %523 = vmatmul.mubr.f32.gmra.mrb[0].mxu0 %v35
    %v524 = vpop.f32.mrb[0].mxu0
    %v525 = vadd.f32 %v282, %v524
    %v526 = vpop.f32.mrb[0].mxu0
    %v527 = vadd.f32 %v286, %v526
    %528 = vdwg.mxu0
    %529 = vmatprep.subr.mxu0 0.0
    %530 = vmatpush1.msra.mxu0 %v43
    %531 = vmatprep.subr.mxu0 0.0
    %532 = vmatpush1.msra.mxu0 %v50
    %533 = vmatprep.subr.mxu0 0.0
    %534 = vmatpush1.msra.mxu0 %v57
    %535 = vmatprep.subr.mxu0 0.0
    %536 = vmatpush1.msra.mxu0 %v64
    %537 = vmatprep.subr.mxu0 0.0
    %538 = vmatpush1.msra.mxu0 %v71
    %539 = vmatprep.subr.mxu0 0.0
    %540 = vmatpush1.msra.mxu0 %v78
    %541 = vmatprep.subr.mxu0 0.0
    %542 = vmatpush1.msra.mxu0 %v85
    %543 = vmatprep.subr.mxu0 0.0
    %544 = vmatpush1.msra.mxu0 %v92
    %545 = vmatprep.subr.mxu0 0.0
    %546 = vmatpush1.msra.mxu0 %v99
    %547 = vmatprep.subr.mxu0 0.0
    %548 = vmatpush1.msra.mxu0 %v106
    %549 = vmatprep.subr.mxu0 0.0
    %550 = vmatpush1.msra.mxu0 %v113
    %551 = vmatprep.subr.mxu0 0.0
    %552 = vmatpush1.msra.mxu0 %v120
    %553 = vmatprep.subr.mxu0 0.0
    %554 = vmatpush1.msra.mxu0 %v127
    %555 = vmatprep.subr.mxu0 0.0
    %556 = vmatpush1.msra.mxu0 %v134
    %557 = vmatprep.subr.mxu0 0.0
    %558 = vmatpush1.msra.mxu0 %v141
    %559 = vmatprep.subr.mxu0 0.0
    %560 = vmatpush1.msra.mxu0 %v148
    %561 = vmatprep.subr.mxu0 0.0
    %562 = vmatpush1.msra.mxu0 %v155
    %563 = vmatprep.subr.mxu0 0.0
    %564 = vmatpush1.msra.mxu0 %v162
    %565 = vmatprep.subr.mxu0 0.0
    %566 = vmatpush1.msra.mxu0 %v169
    %567 = vmatprep.subr.mxu0 0.0
    %568 = vmatpush1.msra.mxu0 %v176
    %569 = vmatprep.subr.mxu0 0.0
    %570 = vmatpush1.msra.mxu0 %v183
    %571 = vmatprep.subr.mxu0 0.0
    %572 = vmatpush1.msra.mxu0 %v190
    %573 = vmatprep.subr.mxu0 0.0
    %574 = vmatpush1.msra.mxu0 %v197
    %575 = vmatprep.subr.mxu0 0.0
    %576 = vmatpush1.msra.mxu0 %v204
    %577 = vmatprep.subr.mxu0 0.0
    %578 = vmatpush1.msra.mxu0 %v211
    %579 = vmatprep.subr.mxu0 0.0
    %580 = vmatpush1.msra.mxu0 %v218
    %581 = vmatprep.subr.mxu0 0.0
    %582 = vmatpush1.msra.mxu0 %v225
    %583 = vmatprep.subr.mxu0 0.0
    %584 = vmatpush1.msra.mxu0 %v232
    %585 = vmatprep.subr.mxu0 0.0
    %586 = vmatpush1.msra.mxu0 %v239
    %587 = vmatprep.subr.mxu0 0.0
    %588 = vmatpush1.msra.mxu0 %v246
    %589 = vmatprep.subr.mxu0 0.0
    %590 = vmatpush1.msra.mxu0 %v253
    %591 = vmatprep.subr.mxu0 0.0
    %592 = vmatpush1.msra.mxu0 %v260
    %593 = vmatprep.mubr.f32.mxu0 %v34
    %594 = vmatmul.mubr.f32.gmra.mrb[0].mxu0 %v33
    %v595 = vpop.f32.mrb[0].mxu0
    %v596 = vadd.f32 %v290, %v595
    %v597 = vpop.f32.mrb[0].mxu0
    %598 = vmatprep.mubr.f32.mxu0 %v36
    %599 = vmatmul.mubr.f32.gmra.mrb[0].mxu0 %v35
    %v600 = vpop.f32.mrb[0].mxu0
    %v601 = vadd.f32 %v290, %v600
    %v602 = vpop.f32.mrb[0].mxu0
    %603 = vdwg.mxu0
    %v604 = vmax.f32 %v365, 0.0
    %v605 = vmax.f32 %v367, 0.0
    %v606 = vmax.f32 %v442, 0.0
    %v607 = vmax.f32 %v444, 0.0
    %v608 = vmax.f32 %v519, 0.0
    %v609 = vmax.f32 %v521, 0.0
    %v610 = vmax.f32 %v596, 0.0
    %v611 = vmax.f32 %v371, 0.0
    %v612 = vmax.f32 %v373, 0.0
    %v613 = vmax.f32 %v448, 0.0
    %v614 = vmax.f32 %v450, 0.0
    %v615 = vmax.f32 %v525, 0.0
    %v616 = vmax.f32 %v527, 0.0
    %v617 = vmax.f32 %v601, 0.0
    %v618 = vld [vmem:[%s3] sm:$0xff]
    %v619 = vld [vmem:[%s3 + $0x8] sm:$0xff]
    %v620 = vld [vmem:[%s3 + $0x10] sm:$0xff]
    %v621 = vld [vmem:[%s3 + $0x18] sm:$0xff]
    %v622 = vld [vmem:[%s3 + $0x20] sm:$0xff]
    %v623 = vld [vmem:[%s3 + $0x28] sm:$0xff]
    %v624 = vld [vmem:[%s3 + $0x30] sm:$0xff]
    %v625 = vld [vmem:[%s3 + $0x38] sm:$0xff]
    %v626 = vld [vmem:[%s3 + $0x40] sm:$0xff]
    %v627 = vld [vmem:[%s3 + $0x48] sm:$0xff]
    %v628 = vld [vmem:[%s3 + $0x50] sm:$0xff]
    %v629 = vld [vmem:[%s3 + $0x58] sm:$0xff]
    %v630 = vld [vmem:[%s3 + $0x60] sm:$0xff]
    %v631 = vld [vmem:[%s3 + $0x68] sm:$0xff]
    %v632 = vld [vmem:[%s3 + $0x70] sm:$0xff]
    %v633 = vld [vmem:[%s3 + $0x78] sm:$0xff]
    %v634 = vld [vmem:[%s3 + $0x80] sm:$0xff]
    %v635 = vld [vmem:[%s3 + $0x88] sm:$0xff]
    %v636 = vld [vmem:[%s3 + $0x90] sm:$0xff]
    %v637 = vld [vmem:[%s3 + $0x98] sm:$0xff]
    %v638 = vld [vmem:[%s3 + $0xa0] sm:$0xff]
    %v639 = vld [vmem:[%s3 + $0xa8] sm:$0xff]
    %v640 = vld [vmem:[%s3 + $0xb0] sm:$0xff]
    %v641 = vld [vmem:[%s3 + $0xb8] sm:$0xff]
    %v642 = vld [vmem:[%s3 + $0xc0] sm:$0xff]
    %v643 = vld [vmem:[%s3 + $0xc8] sm:$0xff]
    %v644 = vld [vmem:[%s3 + $0xd0] sm:$0xff]
    %v645 = vld [vmem:[%s3 + $0xd8] sm:$0xff]
    %v646 = vld [vmem:[%s3 + $0xe0] sm:$0xff]
    %v647 = vld [vmem:[%s3 + $0xe8] sm:$0xff]
    %v648 = vld [vmem:[%s3 + $0xf0] sm:$0xff]
    %v649 = vld [vmem:[%s3 + $0xf8] sm:$0xff]
    %v650 = vld [vmem:[%s3 + $0x100] sm:$0xff]
    %v651 = vld [vmem:[%s3 + $0x108] sm:$0xff]
    %v652 = vld [vmem:[%s3 + $0x110] sm:$0xff]
    %v653 = vld [vmem:[%s3 + $0x118] sm:$0xff]
    %v654 = vld [vmem:[%s3 + $0x120] sm:$0xff]
    %v655 = vld [vmem:[%s3 + $0x128] sm:$0xff]
    %v656 = vld [vmem:[%s3 + $0x130] sm:$0xff]
    %v657 = vld [vmem:[%s3 + $0x138] sm:$0xff]
    %v658 = vld [vmem:[%s3 + $0x140] sm:$0xff]
    %v659 = vld [vmem:[%s3 + $0x148] sm:$0xff]
    %v660 = vld [vmem:[%s3 + $0x150] sm:$0xff]
    %v661 = vld [vmem:[%s3 + $0x158] sm:$0xff]
    %v662 = vld [vmem:[%s3 + $0x160] sm:$0xff]
    %v663 = vld [vmem:[%s3 + $0x168] sm:$0xff]
    %v664 = vld [vmem:[%s3 + $0x170] sm:$0xff]
    %v665 = vld [vmem:[%s3 + $0x178] sm:$0xff]
    %v666 = vld [vmem:[%s3 + $0x180] sm:$0xff]
    %v667 = vld [vmem:[%s3 + $0x188] sm:$0xff]
    %v668 = vld [vmem:[%s3 + $0x190] sm:$0xff]
    %v669 = vld [vmem:[%s3 + $0x198] sm:$0xff]
    %v670 = vld [vmem:[%s3 + $0x1a0] sm:$0xff]
    %v671 = vld [vmem:[%s3 + $0x1a8] sm:$0xff]
    %v672 = vld [vmem:[%s3 + $0x1b0] sm:$0xff]
    %v673 = vld [vmem:[%s3 + $0x1b8] sm:$0xff]
    %v674 = vld [vmem:[%s3 + $0x1c0] sm:$0xff]
    %v675 = vld [vmem:[%s3 + $0x1c8] sm:$0xff]
    %v676 = vld [vmem:[%s3 + $0x1d0] sm:$0xff]
    %v677 = vld [vmem:[%s3 + $0x1d8] sm:$0xff]
    %v678 = vld [vmem:[%s3 + $0x1e0] sm:$0xff]
    %v679 = vld [vmem:[%s3 + $0x1e8] sm:$0xff]
    %v680 = vld [vmem:[%s3 + $0x1f0] sm:$0xff]
    %v681 = vld [vmem:[%s3 + $0x1f8] sm:$0xff]
    %v682 = vld [vmem:[%s3 + $0x200] sm:$0xff]
    %v683 = vld [vmem:[%s3 + $0x208] sm:$0xff]
    %v684 = vld [vmem:[%s3 + $0x210] sm:$0xff]
    %v685 = vld [vmem:[%s3 + $0x218] sm:$0xff]
    %v686 = vld [vmem:[%s3 + $0x220] sm:$0xff]
    %v687 = vld [vmem:[%s3 + $0x228] sm:$0xff]
    %v688 = vld [vmem:[%s3 + $0x230] sm:$0xff]
    %v689 = vld [vmem:[%s3 + $0x238] sm:$0xff]
    %v690 = vld [vmem:[%s3 + $0x240] sm:$0xff]
    %v691 = vld [vmem:[%s3 + $0x248] sm:$0xff]
    %v692 = vld [vmem:[%s3 + $0x250] sm:$0xff]
    %v693 = vld [vmem:[%s3 + $0x258] sm:$0xff]
    %v694 = vld [vmem:[%s3 + $0x260] sm:$0xff]
    %v695 = vld [vmem:[%s3 + $0x268] sm:$0xff]
    %v696 = vld [vmem:[%s3 + $0x270] sm:$0xff]
    %v697 = vld [vmem:[%s3 + $0x278] sm:$0xff]
    %v698 = vld [vmem:[%s3 + $0x280] sm:$0xff]
    %v699 = vld [vmem:[%s3 + $0x288] sm:$0xff]
    %v700 = vld [vmem:[%s3 + $0x290] sm:$0xff]
    %v701 = vld [vmem:[%s3 + $0x298] sm:$0xff]
    %v702 = vld [vmem:[%s3 + $0x2a0] sm:$0xff]
    %v703 = vld [vmem:[%s3 + $0x2a8] sm:$0xff]
    %v704 = vld [vmem:[%s3 + $0x2b0] sm:$0xff]
    %v705 = vld [vmem:[%s3 + $0x2b8] sm:$0xff]
    %v706 = vld [vmem:[%s3 + $0x2c0] sm:$0xff]
    %v707 = vld [vmem:[%s3 + $0x2c8] sm:$0xff]
    %v708 = vld [vmem:[%s3 + $0x2d0] sm:$0xff]
    %v709 = vld [vmem:[%s3 + $0x2d8] sm:$0xff]
    %v710 = vld [vmem:[%s3 + $0x2e0] sm:$0xff]
    %v711 = vld [vmem:[%s3 + $0x2e8] sm:$0xff]
    %v712 = vld [vmem:[%s3 + $0x2f0] sm:$0xff]
    %v713 = vld [vmem:[%s3 + $0x2f8] sm:$0xff]
    %v714 = vld [vmem:[%s3 + $0x300] sm:$0xff]
    %v715 = vld [vmem:[%s3 + $0x308] sm:$0xff]
    %v716 = vld [vmem:[%s3 + $0x310] sm:$0xff]
    %v717 = vld [vmem:[%s3 + $0x318] sm:$0xff]
    %v718 = vld [vmem:[%s3 + $0x320] sm:$0xff]
    %v719 = vld [vmem:[%s3 + $0x328] sm:$0xff]
    %v720 = vld [vmem:[%s3 + $0x330] sm:$0xff]
    %v721 = vld [vmem:[%s3 + $0x338] sm:$0xff]
    %v722 = vld [vmem:[%s3 + $0x340] sm:$0xff]
    %v723 = vld [vmem:[%s3 + $0x348] sm:$0xff]
    %v724 = vld [vmem:[%s3 + $0x350] sm:$0xff]
    %v725 = vld [vmem:[%s3 + $0x358] sm:$0xff]
    %v726 = vld [vmem:[%s4] sm:$0x1]
    %v728 = vlaneseq
    %v729 = vshrl.u32 %v728, 7
    %v730 = vsub.s32 0, %v729
    %v731 = vrot.slane %v726, %v730
    %vm733 = vcmask 785408
    %v735 = vsel %vm733, %v610, 0
    %v738 = vsel %vm733, %v617, 0
    %740 = vmatprep.subr.mxu0 0.0
    %741 = vmatpush1.msra.mxu0 %v618
    %742 = vmatprep.subr.mxu0 0.0
    %743 = vmatpush1.msra.mxu0 %v619
    %744 = vmatprep.subr.mxu0 0.0
    %745 = vmatpush1.msra.mxu0 %v620
    %746 = vmatprep.subr.mxu0 0.0
    %747 = vmatpush1.msra.mxu0 %v621
    %748 = vmatprep.subr.mxu0 0.0
    %749 = vmatpush1.msra.mxu0 %v622
    %750 = vmatprep.subr.mxu0 0.0
    %751 = vmatpush1.msra.mxu0 %v623
    %752 = vmatprep.subr.mxu0 0.0
    %753 = vmatpush1.msra.mxu0 %v624
    %754 = vmatprep.subr.mxu0 0.0
    %755 = vmatpush1.msra.mxu0 %v625
    %756 = vmatprep.subr.mxu0 0.0
    %757 = vmatpush1.msra.mxu0 %v626
    %758 = vmatprep.subr.mxu0 0.0
    %759 = vmatpush1.msra.mxu0 %v627
    %760 = vmatprep.subr.mxu0 0.0
    %761 = vmatpush1.msra.mxu0 %v628
    %762 = vmatprep.subr.mxu0 0.0
    %763 = vmatpush1.msra.mxu0 %v629
    %764 = vmatprep.subr.mxu0 0.0
    %765 = vmatpush1.msra.mxu0 %v630
    %766 = vmatprep.subr.mxu0 0.0
    %767 = vmatpush1.msra.mxu0 %v631
    %768 = vmatprep.subr.mxu0 0.0
    %769 = vmatpush1.msra.mxu0 %v632
    %770 = vmatprep.subr.mxu0 0.0
    %771 = vmatpush1.msra.mxu0 %v633
    %772 = vmatprep.subr.mxu0 0.0
    %773 = vmatpush1.msra.mxu0 %v634
    %774 = vmatprep.subr.mxu0 0.0
    %775 = vmatpush1.msra.mxu0 %v635
    %776 = vmatprep.subr.mxu0 0.0
    %777 = vmatpush1.msra.mxu0 %v636
    %778 = vmatprep.subr.mxu0 0.0
    %779 = vmatpush1.msra.mxu0 %v637
    %780 = vmatprep.subr.mxu0 0.0
    %781 = vmatpush1.msra.mxu0 %v638
    %782 = vmatprep.subr.mxu0 0.0
    %783 = vmatpush1.msra.mxu0 %v639
    %784 = vmatprep.subr.mxu0 0.0
    %785 = vmatpush1.msra.mxu0 %v640
    %786 = vmatprep.subr.mxu0 0.0
    %787 = vmatpush1.msra.mxu0 %v641
    %788 = vmatprep.subr.mxu0 0.0
    %789 = vmatpush1.msra.mxu0 %v642
    %790 = vmatprep.subr.mxu0 0.0
    %791 = vmatpush1.msra.mxu0 %v643
    %792 = vmatprep.subr.mxu0 0.0
    %793 = vmatpush1.msra.mxu0 %v644
    %794 = vmatprep.subr.mxu0 0.0
    %795 = vmatpush1.msra.mxu0 %v645
    %796 = vmatprep.subr.mxu0 0.0
    %797 = vmatpush1.msra.mxu0 %v646
    %798 = vmatprep.subr.mxu0 0.0
    %799 = vmatpush1.msra.mxu0 %v647
    %800 = vmatprep.subr.mxu0 0.0
    %801 = vmatpush1.msra.mxu0 %v648
    %802 = vmatprep.subr.mxu0 0.0
    %803 = vmatpush1.msra.mxu0 %v649
    %804 = vmatprep.mubr.f32.mxu0 %v605
    %805 = vmatmul.mubr.f32.gmra.mrb[0].mxu0 %v604
    %v806 = vpop.f32.mrb[0].mxu0
    %v807 = vadd.f32 %v731, %v806
    %v808 = vpop.f32.mrb[0].mxu0
    %809 = vmatprep.mubr.f32.mxu0 %v612
    %810 = vmatmul.mubr.f32.gmra.mrb[0].mxu0 %v611
    %v811 = vpop.f32.mrb[0].mxu0
    %v812 = vadd.f32 %v731, %v811
    %v813 = vpop.f32.mrb[0].mxu0
    %814 = vdwg.mxu0
    %815 = vmatprep.subr.mxu0 0.0
    %816 = vmatpush1.msra.mxu0 %v650
    %817 = vmatprep.subr.mxu0 0.0
    %818 = vmatpush1.msra.mxu0 %v651
    %819 = vmatprep.subr.mxu0 0.0
    %820 = vmatpush1.msra.mxu0 %v652
    %821 = vmatprep.subr.mxu0 0.0
    %822 = vmatpush1.msra.mxu0 %v653
    %823 = vmatprep.subr.mxu0 0.0
    %824 = vmatpush1.msra.mxu0 %v654
    %825 = vmatprep.subr.mxu0 0.0
    %826 = vmatpush1.msra.mxu0 %v655
    %827 = vmatprep.subr.mxu0 0.0
    %828 = vmatpush1.msra.mxu0 %v656
    %829 = vmatprep.subr.mxu0 0.0
    %830 = vmatpush1.msra.mxu0 %v657
    %831 = vmatprep.subr.mxu0 0.0
    %832 = vmatpush1.msra.mxu0 %v658
    %833 = vmatprep.subr.mxu0 0.0
    %834 = vmatpush1.msra.mxu0 %v659
    %835 = vmatprep.subr.mxu0 0.0
    %836 = vmatpush1.msra.mxu0 %v660
    %837 = vmatprep.subr.mxu0 0.0
    %838 = vmatpush1.msra.mxu0 %v661
    %839 = vmatprep.subr.mxu0 0.0
    %840 = vmatpush1.msra.mxu0 %v662
    %841 = vmatprep.subr.mxu0 0.0
    %842 = vmatpush1.msra.mxu0 %v663
    %843 = vmatprep.subr.mxu0 0.0
    %844 = vmatpush1.msra.mxu0 %v664
    %845 = vmatprep.subr.mxu0 0.0
    %846 = vmatpush1.msra.mxu0 %v665
    %847 = vmatprep.subr.mxu0 0.0
    %848 = vmatpush1.msra.mxu0 %v666
    %849 = vmatprep.subr.mxu0 0.0
    %850 = vmatpush1.msra.mxu0 %v667
    %851 = vmatprep.subr.mxu0 0.0
    %852 = vmatpush1.msra.mxu0 %v668
    %853 = vmatprep.subr.mxu0 0.0
    %854 = vmatpush1.msra.mxu0 %v669
    %855 = vmatprep.subr.mxu0 0.0
    %856 = vmatpush1.msra.mxu0 %v670
    %857 = vmatprep.subr.mxu0 0.0
    %858 = vmatpush1.msra.mxu0 %v671
    %859 = vmatprep.subr.mxu0 0.0
    %860 = vmatpush1.msra.mxu0 %v672
    %861 = vmatprep.subr.mxu0 0.0
    %862 = vmatpush1.msra.mxu0 %v673
    %863 = vmatprep.subr.mxu0 0.0
    %864 = vmatpush1.msra.mxu0 %v674
    %865 = vmatprep.subr.mxu0 0.0
    %866 = vmatpush1.msra.mxu0 %v675
    %867 = vmatprep.subr.mxu0 0.0
    %868 = vmatpush1.msra.mxu0 %v676
    %869 = vmatprep.subr.mxu0 0.0
    %870 = vmatpush1.msra.mxu0 %v677
    %871 = vmatprep.subr.mxu0 0.0
    %872 = vmatpush1.msra.mxu0 %v678
    %873 = vmatprep.subr.mxu0 0.0
    %874 = vmatpush1.msra.mxu0 %v679
    %875 = vmatprep.subr.mxu0 0.0
    %876 = vmatpush1.msra.mxu0 %v680
    %877 = vmatprep.subr.mxu0 0.0
    %878 = vmatpush1.msra.mxu0 %v681
    %879 = vmatprep.mubr.f32.mxu0 %v607
    %880 = vmatmul.mubr.f32.gmra.mrb[0].mxu0 %v606
    %v881 = vpop.f32.mrb[0].mxu0
    %v882 = vadd.f32 %v807, %v881
    %v883 = vpop.f32.mrb[0].mxu0
    %884 = vmatprep.mubr.f32.mxu0 %v614
    %885 = vmatmul.mubr.f32.gmra.mrb[0].mxu0 %v613
    %v886 = vpop.f32.mrb[0].mxu0
    %v887 = vadd.f32 %v812, %v886
    %v888 = vpop.f32.mrb[0].mxu0
    %889 = vdwg.mxu0
    %890 = vmatprep.subr.mxu0 0.0
    %891 = vmatpush1.msra.mxu0 %v682
    %892 = vmatprep.subr.mxu0 0.0
    %893 = vmatpush1.msra.mxu0 %v683
    %894 = vmatprep.subr.mxu0 0.0
    %895 = vmatpush1.msra.mxu0 %v684
    %896 = vmatprep.subr.mxu0 0.0
    %897 = vmatpush1.msra.mxu0 %v685
    %898 = vmatprep.subr.mxu0 0.0
    %899 = vmatpush1.msra.mxu0 %v686
    %900 = vmatprep.subr.mxu0 0.0
    %901 = vmatpush1.msra.mxu0 %v687
    %902 = vmatprep.subr.mxu0 0.0
    %903 = vmatpush1.msra.mxu0 %v688
    %904 = vmatprep.subr.mxu0 0.0
    %905 = vmatpush1.msra.mxu0 %v689
    %906 = vmatprep.subr.mxu0 0.0
    %907 = vmatpush1.msra.mxu0 %v690
    %908 = vmatprep.subr.mxu0 0.0
    %909 = vmatpush1.msra.mxu0 %v691
    %910 = vmatprep.subr.mxu0 0.0
    %911 = vmatpush1.msra.mxu0 %v692
    %912 = vmatprep.subr.mxu0 0.0
    %913 = vmatpush1.msra.mxu0 %v693
    %914 = vmatprep.subr.mxu0 0.0
    %915 = vmatpush1.msra.mxu0 %v694
    %916 = vmatprep.subr.mxu0 0.0
    %917 = vmatpush1.msra.mxu0 %v695
    %918 = vmatprep.subr.mxu0 0.0
    %919 = vmatpush1.msra.mxu0 %v696
    %920 = vmatprep.subr.mxu0 0.0
    %921 = vmatpush1.msra.mxu0 %v697
    %922 = vmatprep.subr.mxu0 0.0
    %923 = vmatpush1.msra.mxu0 %v698
    %924 = vmatprep.subr.mxu0 0.0
    %925 = vmatpush1.msra.mxu0 %v699
    %926 = vmatprep.subr.mxu0 0.0
    %927 = vmatpush1.msra.mxu0 %v700
    %928 = vmatprep.subr.mxu0 0.0
    %929 = vmatpush1.msra.mxu0 %v701
    %930 = vmatprep.subr.mxu0 0.0
    %931 = vmatpush1.msra.mxu0 %v702
    %932 = vmatprep.subr.mxu0 0.0
    %933 = vmatpush1.msra.mxu0 %v703
    %934 = vmatprep.subr.mxu0 0.0
    %935 = vmatpush1.msra.mxu0 %v704
    %936 = vmatprep.subr.mxu0 0.0
    %937 = vmatpush1.msra.mxu0 %v705
    %938 = vmatprep.subr.mxu0 0.0
    %939 = vmatpush1.msra.mxu0 %v706
    %940 = vmatprep.subr.mxu0 0.0
    %941 = vmatpush1.msra.mxu0 %v707
    %942 = vmatprep.subr.mxu0 0.0
    %943 = vmatpush1.msra.mxu0 %v708
    %944 = vmatprep.subr.mxu0 0.0
    %945 = vmatpush1.msra.mxu0 %v709
    %946 = vmatprep.subr.mxu0 0.0
    %947 = vmatpush1.msra.mxu0 %v710
    %948 = vmatprep.subr.mxu0 0.0
    %949 = vmatpush1.msra.mxu0 %v711
    %950 = vmatprep.subr.mxu0 0.0
    %951 = vmatpush1.msra.mxu0 %v712
    %952 = vmatprep.subr.mxu0 0.0
    %953 = vmatpush1.msra.mxu0 %v713
    %954 = vmatprep.mubr.f32.mxu0 %v609
    %955 = vmatmul.mubr.f32.gmra.mrb[0].mxu0 %v608
    %v956 = vpop.f32.mrb[0].mxu0
    %v957 = vadd.f32 %v882, %v956
    %v958 = vpop.f32.mrb[0].mxu0
    %959 = vmatprep.mubr.f32.mxu0 %v616
    %960 = vmatmul.mubr.f32.gmra.mrb[0].mxu0 %v615
    %v961 = vpop.f32.mrb[0].mxu0
    %v962 = vadd.f32 %v887, %v961
    %v963 = vpop.f32.mrb[0].mxu0
    %964 = vdwg.mxu0
    %965 = vmatprep.subr.mxu0 0.0
    %966 = vmatpush1.msra.mxu0 %v714
    %967 = vmatprep.subr.mxu0 0.0
    %968 = vmatpush1.msra.mxu0 %v715
    %969 = vmatprep.subr.mxu0 0.0
    %970 = vmatpush1.msra.mxu0 %v716
    %971 = vmatprep.subr.mxu0 0.0
    %972 = vmatpush1.msra.mxu0 %v717
    %973 = vmatprep.subr.mxu0 0.0
    %974 = vmatpush1.msra.mxu0 %v718
    %975 = vmatprep.subr.mxu0 0.0
    %976 = vmatpush1.msra.mxu0 %v719
    %977 = vmatprep.subr.mxu0 0.0
    %978 = vmatpush1.msra.mxu0 %v720
    %979 = vmatprep.subr.mxu0 0.0
    %980 = vmatpush1.msra.mxu0 %v721
    %981 = vmatprep.subr.mxu0 0.0
    %982 = vmatpush1.msra.mxu0 %v722
    %983 = vmatprep.subr.mxu0 0.0
    %984 = vmatpush1.msra.mxu0 %v723
    %985 = vmatprep.subr.mxu0 0.0
    %986 = vmatpush1.msra.mxu0 %v724
    %987 = vmatprep.subr.mxu0 0.0
    %988 = vmatpush1.msra.mxu0 %v725
    %989 = vmatprep.subr.mxu0 0.0
    %990 = vmatpush1.msra.mxu0 0.0
    %991 = vmatprep.subr.mxu0 0.0
    %992 = vmatpush1.msra.mxu0 0.0
    %993 = vmatprep.subr.mxu0 0.0
    %994 = vmatpush1.msra.mxu0 0.0
    %995 = vmatprep.subr.mxu0 0.0
    %996 = vmatpush1.msra.mxu0 0.0
    %997 = vmatprep.subr.mxu0 0.0
    %998 = vmatpush1.msra.mxu0 0.0
    %999 = vmatprep.subr.mxu0 0.0
    %1000 = vmatpush1.msra.mxu0 0.0
    %1001 = vmatprep.subr.mxu0 0.0
    %1002 = vmatpush1.msra.mxu0 0.0
    %1003 = vmatprep.subr.mxu0 0.0
    %1004 = vmatpush1.msra.mxu0 0.0
    %1005 = vmatprep.subr.mxu0 0.0
    %1006 = vmatpush1.msra.mxu0 0.0
    %1007 = vmatprep.subr.mxu0 0.0
    %1008 = vmatpush1.msra.mxu0 0.0
    %1009 = vmatprep.subr.mxu0 0.0
    %1010 = vmatpush1.msra.mxu0 0.0
    %1011 = vmatprep.subr.mxu0 0.0
    %1012 = vmatpush1.msra.mxu0 0.0
    %1013 = vmatprep.subr.mxu0 0.0
    %1014 = vmatpush1.msra.mxu0 0.0
    %1015 = vmatprep.subr.mxu0 0.0
    %1016 = vmatpush1.msra.mxu0 0.0
    %1017 = vmatprep.subr.mxu0 0.0
    %1018 = vmatpush1.msra.mxu0 0.0
    %1019 = vmatprep.subr.mxu0 0.0
    %1020 = vmatpush1.msra.mxu0 0.0
    %1021 = vmatprep.subr.mxu0 0.0
    %1022 = vmatpush1.msra.mxu0 0.0
    %1023 = vmatprep.subr.mxu0 0.0
    %1024 = vmatpush1.msra.mxu0 0.0
    %1025 = vmatprep.subr.mxu0 0.0
    %1026 = vmatpush1.msra.mxu0 0.0
    %1027 = vmatprep.subr.mxu0 0.0
    %1028 = vmatpush1.msra.mxu0 0.0
    %1029 = vmatprep.mubr.f32.mxu0 0.0
    %1030 = vmatmul.mubr.f32.gmra.mrb[0].mxu0 %v735
    %v1031 = vpop.f32.mrb[0].mxu0
    %v1032 = vadd.f32 %v957, %v1031
    %v1033 = vpop.f32.mrb[0].mxu0
    %1034 = vmatprep.mubr.f32.mxu0 0.0
    %1035 = vmatmul.mubr.f32.gmra.mrb[0].mxu0 %v738
    %v1036 = vpop.f32.mrb[0].mxu0
    %v1037 = vadd.f32 %v962, %v1036
    %v1038 = vpop.f32.mrb[0].mxu0
    %1039 = vdwg.mxu0
    %v1040 = vmax.f32 %v1032, 0.0
    %v1041 = vmax.f32 %v1037, 0.0
    %v1042 = vld [vmem:[%s5] sm:$0xff]
    %v1043 = vld [vmem:[%s5 + $0x8] sm:$0xff]
    %v1044 = vld [vmem:[%s5 + $0x10] sm:$0xff]
    %v1045 = vld [vmem:[%s5 + $0x18] sm:$0xff]
    %v1046 = vld [vmem:[%s6] sm:$0x1]
    %v1048 = vlaneseq
    %v1049 = vshrl.u32 %v1048, 7
    %v1050 = vsub.s32 0, %v1049
    %v1051 = vrot.slane %v1046, %v1050
    %vm1053 = vcmask 261120
    %v1055 = vsel %vm1053, %v1040, 0
    %v1058 = vsel %vm1053, %v1041, 0
    %1060 = vmatprep.subr.mxu0 0.0
    %1061 = vmatpush1.msra.mxu0 %v1042
    %1062 = vmatprep.subr.mxu0 0.0
    %1063 = vmatpush1.msra.mxu0 %v1043
    %1064 = vmatprep.subr.mxu0 0.0
    %1065 = vmatpush1.msra.mxu0 %v1044
    %1066 = vmatprep.subr.mxu0 0.0
    %1067 = vmatpush1.msra.mxu0 %v1045
    %1068 = vmatprep.subr.mxu0 0.0
    %1069 = vmatpush1.msra.mxu0 0.0
    %1070 = vmatprep.subr.mxu0 0.0
    %1071 = vmatpush1.msra.mxu0 0.0
    %1072 = vmatprep.subr.mxu0 0.0
    %1073 = vmatpush1.msra.mxu0 0.0
    %1074 = vmatprep.subr.mxu0 0.0
    %1075 = vmatpush1.msra.mxu0 0.0
    %1076 = vmatprep.subr.mxu0 0.0
    %1077 = vmatpush1.msra.mxu0 0.0
    %1078 = vmatprep.subr.mxu0 0.0
    %1079 = vmatpush1.msra.mxu0 0.0
    %1080 = vmatprep.subr.mxu0 0.0
    %1081 = vmatpush1.msra.mxu0 0.0
    %1082 = vmatprep.subr.mxu0 0.0
    %1083 = vmatpush1.msra.mxu0 0.0
    %1084 = vmatprep.subr.mxu0 0.0
    %1085 = vmatpush1.msra.mxu0 0.0
    %1086 = vmatprep.subr.mxu0 0.0
    %1087 = vmatpush1.msra.mxu0 0.0
    %1088 = vmatprep.subr.mxu0 0.0
    %1089 = vmatpush1.msra.mxu0 0.0
    %1090 = vmatprep.subr.mxu0 0.0
    %1091 = vmatpush1.msra.mxu0 0.0
    %1092 = vmatprep.subr.mxu0 0.0
    %1093 = vmatpush1.msra.mxu0 0.0
    %1094 = vmatprep.subr.mxu0 0.0
    %1095 = vmatpush1.msra.mxu0 0.0
    %1096 = vmatprep.subr.mxu0 0.0
    %1097 = vmatpush1.msra.mxu0 0.0
    %1098 = vmatprep.subr.mxu0 0.0
    %1099 = vmatpush1.msra.mxu0 0.0
    %1100 = vmatprep.subr.mxu0 0.0
    %1101 = vmatpush1.msra.mxu0 0.0
    %1102 = vmatprep.subr.mxu0 0.0
    %1103 = vmatpush1.msra.mxu0 0.0
    %1104 = vmatprep.subr.mxu0 0.0
    %1105 = vmatpush1.msra.mxu0 0.0
    %1106 = vmatprep.subr.mxu0 0.0
    %1107 = vmatpush1.msra.mxu0 0.0
    %1108 = vmatprep.subr.mxu0 0.0
    %1109 = vmatpush1.msra.mxu0 0.0
    %1110 = vmatprep.subr.mxu0 0.0
    %1111 = vmatpush1.msra.mxu0 0.0
    %1112 = vmatprep.subr.mxu0 0.0
    %1113 = vmatpush1.msra.mxu0 0.0
    %1114 = vmatprep.subr.mxu0 0.0
    %1115 = vmatpush1.msra.mxu0 0.0
    %1116 = vmatprep.subr.mxu0 0.0
    %1117 = vmatpush1.msra.mxu0 0.0
    %1118 = vmatprep.subr.mxu0 0.0
    %1119 = vmatpush1.msra.mxu0 0.0
    %1120 = vmatprep.subr.mxu0 0.0
    %1121 = vmatpush1.msra.mxu0 0.0
    %1122 = vmatprep.subr.mxu0 0.0
    %1123 = vmatpush1.msra.mxu0 0.0
    %1124 = vmatprep.mubr.f32.mxu0 0.0
    %1125 = vmatmul.mubr.f32.gmra.mrb[0].mxu0 %v1055
    %v1126 = vpop.f32.mrb[0].mxu0
    %v1127 = vadd.f32 %v1051, %v1126
    %v1128 = vpop.f32.mrb[0].mxu0
    %1129 = vmatprep.mubr.f32.mxu0 0.0
    %1130 = vmatmul.mubr.f32.gmra.mrb[0].mxu0 %v1058
    %v1131 = vpop.f32.mrb[0].mxu0
    %v1132 = vadd.f32 %v1051, %v1131
    %v1133 = vpop.f32.mrb[0].mxu0
    %1134 = vdwg.mxu0
    %v1135 = vmax.f32 %v1127, 0.0
    %v1136 = vmax.f32 %v1132, 0.0
    %v1137 = vld [vmem:[%s7] sm:$0xff]
    %v1138 = vld [vmem:[%s7 + $0x8] sm:$0xff]
    %v1139 = vld [vmem:[%s7 + $0x10] sm:$0xff]
    %v1140 = vld [vmem:[%s7 + $0x18] sm:$0xff]
    %v1141 = vld [vmem:[%s8] sm:$0x1]
    %v1143 = vlaneseq
    %v1144 = vshrl.u32 %v1143, 7
    %v1145 = vsub.s32 0, %v1144
    %v1146 = vrot.slane %v1141, %v1145
    %v1149 = vsel %vm1053, %v1135, 0
    %v1152 = vsel %vm1053, %v1136, 0
    %1154 = vmatprep.subr.mxu0 0.0
    %1155 = vmatpush1.msra.mxu0 %v1137
    %1156 = vmatprep.subr.mxu0 0.0
    %1157 = vmatpush1.msra.mxu0 %v1138
    %1158 = vmatprep.subr.mxu0 0.0
    %1159 = vmatpush1.msra.mxu0 %v1139
    %1160 = vmatprep.subr.mxu0 0.0
    %1161 = vmatpush1.msra.mxu0 %v1140
    %1162 = vmatprep.subr.mxu0 0.0
    %1163 = vmatpush1.msra.mxu0 0.0
    %1164 = vmatprep.subr.mxu0 0.0
    %1165 = vmatpush1.msra.mxu0 0.0
    %1166 = vmatprep.subr.mxu0 0.0
    %1167 = vmatpush1.msra.mxu0 0.0
    %1168 = vmatprep.subr.mxu0 0.0
    %1169 = vmatpush1.msra.mxu0 0.0
    %1170 = vmatprep.subr.mxu0 0.0
    %1171 = vmatpush1.msra.mxu0 0.0
    %1172 = vmatprep.subr.mxu0 0.0
    %1173 = vmatpush1.msra.mxu0 0.0
    %1174 = vmatprep.subr.mxu0 0.0
    %1175 = vmatpush1.msra.mxu0 0.0
    %1176 = vmatprep.subr.mxu0 0.0
    %1177 = vmatpush1.msra.mxu0 0.0
    %1178 = vmatprep.subr.mxu0 0.0
    %1179 = vmatpush1.msra.mxu0 0.0
    %1180 = vmatprep.subr.mxu0 0.0
    %1181 = vmatpush1.msra.mxu0 0.0
    %1182 = vmatprep.subr.mxu0 0.0
    %1183 = vmatpush1.msra.mxu0 0.0
    %1184 = vmatprep.subr.mxu0 0.0
    %1185 = vmatpush1.msra.mxu0 0.0
    %1186 = vmatprep.subr.mxu0 0.0
    %1187 = vmatpush1.msra.mxu0 0.0
    %1188 = vmatprep.subr.mxu0 0.0
    %1189 = vmatpush1.msra.mxu0 0.0
    %1190 = vmatprep.subr.mxu0 0.0
    %1191 = vmatpush1.msra.mxu0 0.0
    %1192 = vmatprep.subr.mxu0 0.0
    %1193 = vmatpush1.msra.mxu0 0.0
    %1194 = vmatprep.subr.mxu0 0.0
    %1195 = vmatpush1.msra.mxu0 0.0
    %1196 = vmatprep.subr.mxu0 0.0
    %1197 = vmatpush1.msra.mxu0 0.0
    %1198 = vmatprep.subr.mxu0 0.0
    %1199 = vmatpush1.msra.mxu0 0.0
    %1200 = vmatprep.subr.mxu0 0.0
    %1201 = vmatpush1.msra.mxu0 0.0
    %1202 = vmatprep.subr.mxu0 0.0
    %1203 = vmatpush1.msra.mxu0 0.0
    %1204 = vmatprep.subr.mxu0 0.0
    %1205 = vmatpush1.msra.mxu0 0.0
    %1206 = vmatprep.subr.mxu0 0.0
    %1207 = vmatpush1.msra.mxu0 0.0
    %1208 = vmatprep.subr.mxu0 0.0
    %1209 = vmatpush1.msra.mxu0 0.0
    %1210 = vmatprep.subr.mxu0 0.0
    %1211 = vmatpush1.msra.mxu0 0.0
    %1212 = vmatprep.subr.mxu0 0.0
    %1213 = vmatpush1.msra.mxu0 0.0
    %1214 = vmatprep.subr.mxu0 0.0
    %1215 = vmatpush1.msra.mxu0 0.0
    %1216 = vmatprep.subr.mxu0 0.0
    %1217 = vmatpush1.msra.mxu0 0.0
    %1218 = vmatprep.mubr.f32.mxu0 0.0
    %1219 = vmatmul.mubr.f32.gmra.mrb[0].mxu0 %v1149
    %v1220 = vpop.f32.mrb[0].mxu0
    %v1221 = vadd.f32 %v1146, %v1220
    %v1222 = vpop.f32.mrb[0].mxu0
    %1223 = vmatprep.mubr.f32.mxu0 0.0
    %1224 = vmatmul.mubr.f32.gmra.mrb[0].mxu0 %v1152
    %v1225 = vpop.f32.mrb[0].mxu0
    %v1226 = vadd.f32 %v1146, %v1225
    %v1227 = vpop.f32.mrb[0].mxu0
    %1228 = vdwg.mxu0
    %1229 = vst [vmem:[#allocation2] sm:$0xff] %v1221
    %1230 = vst [vmem:[#allocation2 + $0x8] sm:$0xff] %v1226
    // Predicated region
    $region38: #{tpu_custom_call.1} parent=1 // pred_check
      _
    $region39: #{tpu_custom_call.1} parent=1 // pred_check_branch
      %1232 = sbr.rel (0) target = $region41
    $region40: #{tpu_custom_call.1} parent=1 // pred_region
      %s1234 = ssub.s32 256, 256
      %1235 = vsyncadd [#allocation3], %s1234
      %s1236 = sshll.u32 [#allocation2], 4
      %s1237 = int_to_ptr.vmem [resolvable:$true] %s1236
      %1242 = dma.vmem_to_hbm [thread:$0]  %s1237, 256, %s9, [#allocation3], 128, 128, 8
    $region41: #{tpu_custom_call.1} parent=1 // pred_fallthru
      _
    // Predicated region
    $region42: #{tpu_custom_call.1} parent=1 // pred_check
      _
    $region43: #{tpu_custom_call.1} parent=1 // pred_check_branch
      %1244 = sbr.rel (0) target = $region45
    $region44: #{tpu_custom_call.1} parent=1 // pred_region
      %1245 = dma.done [#allocation3], 256
    $region45: #{tpu_custom_call.1} parent=1 // pred_fallthru
      _
    %1246 = vsyncpa [#allocation3], 1

</llo_original>
